<compile_context>
chip_gen: v5e
topology: v5e:2x2
jax: 0.10.0
libtpu: 0.0.40
codegen_flags: <defaults>
</compile_context>

<pallas_src>
import jax
import jax.numpy as jnp
import numpy as np
from jax import lax
from jax.experimental import pallas as pl
from jax.experimental.pallas import tpu as pltpu


# ---------------------------------------------------------------------------
# constant-matrix builders (host-side, numpy; passed to the kernel as inputs)
# ---------------------------------------------------------------------------
def _conv_weight_mat(w_hwio, cin_pad):
    """(kh,kw,Cin,Cout) -> (Cout, kh*kw*cin_pad), column order (ky*kw+kx)*cin_pad+ci."""
    kh, kw, cin, cout = w_hwio.shape
    w = jnp.transpose(w_hwio, (3, 0, 1, 2))                       # (Cout, kh, kw, Cin)
    if cin_pad > cin:
        w = jnp.pad(w, ((0, 0), (0, 0), (0, 0), (0, cin_pad - cin)))
    return w.reshape(cout, kh * kw * cin_pad).astype(jnp.float32)


def _conv_masks(h, w):
    """(9, h*w) 0/1 validity masks for the 9 taps of a pad=1 3x3 conv."""
    m = np.zeros((9, h * w), np.float32)
    for ky in range(3):
        for kx in range(3):
            k = ky * 3 + kx
            for y in range(h):
                for x in range(w):
                    yy, xx = y + ky - 1, x + kx - 1
                    if 0 <= yy < h and 0 <= xx < w:
                        m[k, y * w + x] = 1.0
    return jnp.asarray(m)


def _pool_select(h, w):
    """(h*w, (h//2)*(w//2)) 0/1 matrix selecting the top-left lane of each 2x2 window."""
    ho, wo = h // 2, w // 2
    c = np.zeros((h * w, ho * wo), np.float32)
    for io in range(ho):
        for jo in range(wo):
            c[(2 * io) * w + 2 * jo, io * wo + jo] = 1.0
    return jnp.asarray(c)


def _tconv_phase_weights(tw):
    """(2,2,Cin,Cout) -> (4, Cout, Cin), phase index p = dy*2 + dx."""
    cin, cout = tw.shape[2], tw.shape[3]
    return jnp.transpose(tw, (0, 1, 3, 2)).reshape(4, cout, cin).astype(jnp.float32)


def _tconv_scatter(h, w):
    """(4, h*w, 4*h*w) 0/1 scatter: phase p=(dy,dx) lane i*w+j -> lane (2i+dy)*2w + 2j+dx."""
    wo = 2 * w
    s = np.zeros((4, h * w, (2 * h) * wo), np.float32)
    for dy in range(2):
        for dx in range(2):
            p = dy * 2 + dx
            for i in range(h):
                for j in range(w):
                    s[p, i * w + j, (2 * i + dy) * wo + (2 * j + dx)] = 1.0
    return jnp.asarray(s)


# ---------------------------------------------------------------------------
# wrapper + kernel
# ---------------------------------------------------------------------------
def conv_autoencoder_forward(x_nchw, w1, b1, w2, b2, tw1, tb1, tw2, tb2):
    """x_nchw: (N,3,H,W). conv weights: (3,3,Cin,Cout). tconv weights: (2,2,Cin,Cout)."""
    n, cin, ih, iw = x_nchw.shape
    assert cin == 3 and ih % 4 == 0 and iw % 4 == 0
    ih2, iw2 = ih // 2, iw // 2
    ih4, iw4 = ih // 4, iw // 4
    hw, cin_pad = ih * iw, 8                      # pad input channels 3->8 (sublane aligned)
    cout_final = tw2.shape[3]

    # ---- parameter / constant prep (layout plumbing outside the kernel) ----
    x_flat = jnp.pad(x_nchw.astype(jnp.float32),
                     ((0, 0), (0, cin_pad - cin), (0, 0), (0, 0))).reshape(n, cin_pad, hw)

    w1m = _conv_weight_mat(w1, cin_pad)           # (16, 72)
    w2m = _conv_weight_mat(w2, w2.shape[2])       # (4, 144)
    b1c = b1.reshape(-1, 1).astype(jnp.float32)   # (16, 1)
    b2c = b2.reshape(-1, 1).astype(jnp.float32)   # (4, 1)
    m1 = _conv_masks(ih, iw)                      # (9, 256)
    m2 = _conv_masks(ih2, iw2)                    # (9, 64)
    p1 = _pool_select(ih, iw)                     # (256, 64)
    p2 = _pool_select(ih2, iw2)                   # (64, 16)
    tw1p = _tconv_phase_weights(tw1)              # (4, 16, 4)
    tw2p = _tconv_phase_weights(tw2)              # (4, 3, 16)
    tb1c = tb1.reshape(-1, 1).astype(jnp.float32)
    tb2c = tb2.reshape(-1, 1).astype(jnp.float32)
    s1 = _tconv_scatter(ih4, iw4)                 # (4, 16, 64)
    s2 = _tconv_scatter(ih2, iw2)                 # (4, 64, 256)

    consts = [w1m, b1c, m1, p1, w2m, b2c, m2, p2, tw1p, tb1c, s1, tw2p, tb2c, s2]

    def kernel(x_ref,
               w1_ref, b1_ref, m1_ref, p1_ref,
               w2_ref, b2_ref, m2_ref, p2_ref,
               tw1_ref, tb1_ref, s1_ref,
               tw2_ref, tb2_ref, s2_ref,
               out_ref):
        f32 = jnp.float32

        def shift_lanes(v, s):
            # out[:, p] = v[:, p + s]  (zero fill past the ends); s is a Python int.
            c, l = v.shape
            if s == 0:
                return v
            if s > 0:
                return jnp.concatenate([v[:, s:], jnp.zeros((c, s), v.dtype)], axis=1)
            return jnp.concatenate([jnp.zeros((c, -s), v.dtype), v[:, :s]], axis=1)

        def conv3x3_relu(v, m_ref, w_ref, b_ref, img_w):
            # v: (Cin, HW) -> (Cout, HW); one fused im2col matmul, no pad buffer.
            taps = []
            for ky in range(3):
                for kx in range(3):
                    k = ky * 3 + kx
                    shifted = shift_lanes(v, (ky - 1) * img_w + (kx - 1))
                    taps.append(shifted * m_ref[k:k + 1, :])
            patches = jnp.concatenate(taps, axis=0)                    # (9*Cin, HW)
            acc = jnp.dot(w_ref[...], patches, preferred_element_type=f32) + b_ref[...]
            return jnp.maximum(acc, 0.0)

        def maxpool2x2(v, sel_ref, img_w):
            # pairwise VPU max of lane-shifted copies + 0/1 selection matmul.
            m = jnp.maximum(jnp.maximum(v, shift_lanes(v, 1)),
                            jnp.maximum(shift_lanes(v, img_w),
                                        shift_lanes(v, img_w + 1)))
            return jnp.dot(m, sel_ref[...], preferred_element_type=f32)  # (C, HW//4)

        def tconv2x2(v, w_ref, b_ref, s_ref, act):
            # v: (Cin, HWin) -> (Cout, 4*HWin); 4 phase matmuls + 0/1 scatter matmuls.
            out = None
            for p in range(4):
                y = act(jnp.dot(w_ref[p], v, preferred_element_type=f32) + b_ref[...])
                contrib = jnp.dot(y, s_ref[p], preferred_element_type=f32)
                out = contrib if out is None else out + contrib
            return out

        relu = lambda t: jnp.maximum(t, 0.0)
        sigmoid = lambda t: 0.5 * (jnp.tanh(0.5 * t) + 1.0)            # EUP tanh path

        x = x_ref[0]                                                   # (8, H*W)
        h = conv3x3_relu(x, m1_ref, w1_ref, b1_ref, iw)                # (16, H*W)
        h = maxpool2x2(h, p1_ref, iw)                                  # (16, H*W/4)
        h = conv3x3_relu(h, m2_ref, w2_ref, b2_ref, iw2)               # (4,  H*W/4)
        h = maxpool2x2(h, p2_ref, iw2)                                 # (4,  H*W/16)
        h = tconv2x2(h, tw1_ref, tb1_ref, s1_ref, relu)                # (16, H*W/4)
        h = tconv2x2(h, tw2_ref, tb2_ref, s2_ref, sigmoid)             # (3,  H*W)
        out_ref[0] = h

    def _const_spec(a):
        return pl.BlockSpec(a.shape, lambda i, nd=a.ndim: (0,) * nd)

    out_flat = pl.pallas_call(
        kernel,
        out_shape=jax.ShapeDtypeStruct((n, cout_final, hw), jnp.float32),
        grid_spec=pltpu.PrefetchScalarGridSpec(
            num_scalar_prefetch=0,
            grid=(n,),
            in_specs=[pl.BlockSpec((1, cin_pad, hw), lambda i: (i, 0, 0))]
                     + [_const_spec(a) for a in consts],
            out_specs=pl.BlockSpec((1, cout_final, hw), lambda i: (i, 0, 0)),
        ),
        compiler_params=pltpu.CompilerParams(dimension_semantics=("parallel",)),
    )(x_flat, *consts)

    # lane-dense (N, C, H*W) output -> NCHW by a free reshape (no transpose).
    return out_flat.reshape(n, cout_final, ih, iw)


# ---------------------------------------------------------------------------
# pure-JAX reference (sanity check of the Pallas lowering)
# ---------------------------------------------------------------------------
def reference_forward(x_nchw, w1, b1, w2, b2, tw1, tb1, tw2, tb2):
    dn = ('NHWC', 'HWIO', 'NHWC')
    hi = lax.Precision.HIGHEST
    x = jnp.transpose(x_nchw, (0, 2, 3, 1)).astype(jnp.float32)

    h = lax.conv_general_dilated(x, w1, (1, 1), 'SAME', dimension_numbers=dn, precision=hi)
    h = jnp.maximum(h + b1.reshape(1, 1, 1, -1), 0.0)
    h = lax.reduce_window(h, -jnp.inf, lax.max, (1, 2, 2, 1), (1, 2, 2, 1), 'VALID')
    h = lax.conv_general_dilated(h, w2, (1, 1), 'SAME', dimension_numbers=dn, precision=hi)
    h = jnp.maximum(h + b2.reshape(1, 1, 1, -1), 0.0)
    h = lax.reduce_window(h, -jnp.inf, lax.max, (1, 2, 2, 1), (1, 2, 2, 1), 'VALID')

    def tconv_ref(xx, w, b):
        N, H, W, _ = xx.shape
        Cout = w.shape[-1]
        out = jnp.zeros((N, 2 * H, 2 * W, Cout), jnp.float32)
        for dy in range(2):
            for dx in range(2):
                y = jnp.einsum('nhwc,co->nhwo', xx, w[dy, dx], precision=hi)
                out = out.at[:, dy::2, dx::2, :].set(y)
        return out + b.reshape(1, 1, 1, -1)

    h = jnp.maximum(tconv_ref(h, tw1, tb1), 0.0)
    h = jax.nn.sigmoid(tconv_ref(h, tw2, tb2))
    return jnp.transpose(h, (0, 3, 1, 2))


# ---------------------------------------------------------------------------
if __name__ == "__main__":
    key = jax.random.PRNGKey(0)
    ks = jax.random.split(key, 9)

    # Input in PyTorch NCHW convention: batch=2, channels=3, 16x16 spatial.
    x_nchw = jax.random.normal(ks[0], (2, 3, 16, 16), jnp.float32)

    # Deterministic synthetic parameters, generated in PyTorch layouts:
    conv1_w = 0.2 * jax.random.normal(ks[1], (16, 3, 3, 3), jnp.float32)   # (Cout,Cin,kh,kw)
    conv1_b = 0.1 * jax.random.normal(ks[2], (16,), jnp.float32)
    conv2_w = 0.2 * jax.random.normal(ks[3], (4, 16, 3, 3), jnp.float32)
    conv2_b = 0.1 * jax.random.normal(ks[4], (4,), jnp.float32)
    tconv1_w = 0.2 * jax.random.normal(ks[5], (4, 16, 2, 2), jnp.float32)  # (Cin,Cout,kh,kw)
    tconv1_b = 0.1 * jax.random.normal(ks[6], (16,), jnp.float32)
    tconv2_w = 0.2 * jax.random.normal(ks[7], (16, 3, 2, 2), jnp.float32)
    tconv2_b = 0.1 * jax.random.normal(ks[8], (3,), jnp.float32)

    # Convert to kernel layout (kh, kw, Cin, Cout).
    w1 = jnp.transpose(conv1_w, (2, 3, 1, 0))
    w2 = jnp.transpose(conv2_w, (2, 3, 1, 0))
    tw1 = jnp.transpose(tconv1_w, (2, 3, 0, 1))
    tw2 = jnp.transpose(tconv2_w, (2, 3, 0, 1))

    out = conv_autoencoder_forward(x_nchw, w1, conv1_b, w2, conv2_b,
                                   tw1, tconv1_b, tw2, tconv2_b)
    out = jax.block_until_ready(out)
    assert out.shape == (2, 3, 16, 16), out.shape

    ref = reference_forward(x_nchw, w1, conv1_b, w2, conv2_b,
                            tw1, tconv1_b, tw2, tconv2_b)
    max_err = float(jnp.max(jnp.abs(out - ref)))
    assert max_err < 2e-3, f"mismatch vs reference: max abs err = {max_err}"

    print("KERNEL_OK")
</pallas_src>

<mosaic_0001>
module attributes {stable_mosaic.version = 11 : i64} {
  func.func @kernel(%arg0: i32, %arg1: memref<1x8x256xf32, #tpu.memory_space<vmem>>, %arg2: memref<16x72xf32, #tpu.memory_space<vmem>>, %arg3: memref<16x1xf32, #tpu.memory_space<vmem>>, %arg4: memref<9x256xf32, #tpu.memory_space<vmem>>, %arg5: memref<256x64xf32, #tpu.memory_space<vmem>>, %arg6: memref<4x144xf32, #tpu.memory_space<vmem>>, %arg7: memref<4x1xf32, #tpu.memory_space<vmem>>, %arg8: memref<9x64xf32, #tpu.memory_space<vmem>>, %arg9: memref<64x16xf32, #tpu.memory_space<vmem>>, %arg10: memref<4x16x4xf32, #tpu.memory_space<vmem>>, %arg11: memref<16x1xf32, #tpu.memory_space<vmem>>, %arg12: memref<4x16x64xf32, #tpu.memory_space<vmem>>, %arg13: memref<4x3x16xf32, #tpu.memory_space<vmem>>, %arg14: memref<3x1xf32, #tpu.memory_space<vmem>>, %arg15: memref<4x64x256xf32, #tpu.memory_space<vmem>>, %arg16: memref<1x3x256xf32, #tpu.memory_space<vmem>>) attributes {dimension_semantics = [#tpu.dimension_semantics<parallel>], iteration_bounds = array<i64: 2>, scalar_prefetch = 0 : i64, scratch_operands = 0 : i64, tpu.core_type = #tpu.core_type<tc>, window_params = [{transform_indices = @transform_0, window_bounds = array<i64: 1, 8, 256>}, {pipeline_mode = #tpu.pipeline_mode<synchronous>, transform_indices = @transform_1, window_bounds = array<i64: 16, 72>}, {pipeline_mode = #tpu.pipeline_mode<synchronous>, transform_indices = @transform_2, window_bounds = array<i64: 16, 1>}, {pipeline_mode = #tpu.pipeline_mode<synchronous>, transform_indices = @transform_3, window_bounds = array<i64: 9, 256>}, {pipeline_mode = #tpu.pipeline_mode<synchronous>, transform_indices = @transform_4, window_bounds = array<i64: 256, 64>}, {pipeline_mode = #tpu.pipeline_mode<synchronous>, transform_indices = @transform_5, window_bounds = array<i64: 4, 144>}, {pipeline_mode = #tpu.pipeline_mode<synchronous>, transform_indices = @transform_6, window_bounds = array<i64: 4, 1>}, {pipeline_mode = #tpu.pipeline_mode<synchronous>, transform_indices = @transform_7, window_bounds = array<i64: 9, 64>}, {pipeline_mode = #tpu.pipeline_mode<synchronous>, transform_indices = @transform_8, window_bounds = array<i64: 64, 16>}, {pipeline_mode = #tpu.pipeline_mode<synchronous>, transform_indices = @transform_9, window_bounds = array<i64: 4, 16, 4>}, {pipeline_mode = #tpu.pipeline_mode<synchronous>, transform_indices = @transform_10, window_bounds = array<i64: 16, 1>}, {pipeline_mode = #tpu.pipeline_mode<synchronous>, transform_indices = @transform_11, window_bounds = array<i64: 4, 16, 64>}, {pipeline_mode = #tpu.pipeline_mode<synchronous>, transform_indices = @transform_12, window_bounds = array<i64: 4, 3, 16>}, {pipeline_mode = #tpu.pipeline_mode<synchronous>, transform_indices = @transform_13, window_bounds = array<i64: 3, 1>}, {pipeline_mode = #tpu.pipeline_mode<synchronous>, transform_indices = @transform_14, window_bounds = array<i64: 4, 64, 256>}, {transform_indices = @transform_15, window_bounds = array<i64: 1, 3, 256>}]} {
    %c0 = arith.constant 0 : index
    %c0_0 = arith.constant 0 : index
    %c0_1 = arith.constant 0 : index
    %0 = vector.load %arg1[%c0, %c0_0, %c0_1] : memref<1x8x256xf32, #tpu.memory_space<vmem>>, vector<1x8x256xf32>
    %1 = vector.shape_cast %0 : vector<1x8x256xf32> to vector<8x256xf32>
    %cst = arith.constant 0.000000e+00 : f32
    %2 = vector.broadcast %cst : f32 to vector<8x17xf32>
    %3 = vector.extract_strided_slice %1 {offsets = [0, 0], sizes = [8, 239], strides = [1, 1]} : vector<8x256xf32> to vector<8x239xf32>
    %4 = tpu.concatenate %2, %3 in 1 : vector<8x17xf32>, vector<8x239xf32> -> vector<8x256xf32>
    %c0_2 = arith.constant 0 : index
    %c0_3 = arith.constant 0 : index
    %5 = vector.load %arg4[%c0_2, %c0_3] : memref<9x256xf32, #tpu.memory_space<vmem>>, vector<1x256xf32>
    %6 = vector.broadcast %5 : vector<1x256xf32> to vector<8x256xf32>
    %7 = arith.mulf %4, %6 : vector<8x256xf32>
    %cst_4 = arith.constant 0.000000e+00 : f32
    %8 = vector.broadcast %cst_4 : f32 to vector<8x16xf32>
    %9 = vector.extract_strided_slice %1 {offsets = [0, 0], sizes = [8, 240], strides = [1, 1]} : vector<8x256xf32> to vector<8x240xf32>
    %10 = tpu.concatenate %8, %9 in 1 : vector<8x16xf32>, vector<8x240xf32> -> vector<8x256xf32>
    %c1 = arith.constant 1 : index
    %c0_5 = arith.constant 0 : index
    %11 = vector.load %arg4[%c1, %c0_5] : memref<9x256xf32, #tpu.memory_space<vmem>>, vector<1x256xf32>
    %12 = vector.broadcast %11 : vector<1x256xf32> to vector<8x256xf32>
    %13 = arith.mulf %10, %12 : vector<8x256xf32>
    %cst_6 = arith.constant 0.000000e+00 : f32
    %14 = vector.broadcast %cst_6 : f32 to vector<8x15xf32>
    %15 = vector.extract_strided_slice %1 {offsets = [0, 0], sizes = [8, 241], strides = [1, 1]} : vector<8x256xf32> to vector<8x241xf32>
    %16 = tpu.concatenate %14, %15 in 1 : vector<8x15xf32>, vector<8x241xf32> -> vector<8x256xf32>
    %c2 = arith.constant 2 : index
    %c0_7 = arith.constant 0 : index
    %17 = vector.load %arg4[%c2, %c0_7] : memref<9x256xf32, #tpu.memory_space<vmem>>, vector<1x256xf32>
    %18 = vector.broadcast %17 : vector<1x256xf32> to vector<8x256xf32>
    %19 = arith.mulf %16, %18 : vector<8x256xf32>
    %cst_8 = arith.constant 0.000000e+00 : f32
    %20 = vector.broadcast %cst_8 : f32 to vector<8x1xf32>
    %21 = vector.extract_strided_slice %1 {offsets = [0, 0], sizes = [8, 255], strides = [1, 1]} : vector<8x256xf32> to vector<8x255xf32>
    %22 = tpu.concatenate %20, %21 in 1 : vector<8x1xf32>, vector<8x255xf32> -> vector<8x256xf32>
    %c3 = arith.constant 3 : index
    %c0_9 = arith.constant 0 : index
    %23 = vector.load %arg4[%c3, %c0_9] : memref<9x256xf32, #tpu.memory_space<vmem>>, vector<1x256xf32>
    %24 = vector.broadcast %23 : vector<1x256xf32> to vector<8x256xf32>
    %25 = arith.mulf %22, %24 : vector<8x256xf32>
    %c4 = arith.constant 4 : index
    %c0_10 = arith.constant 0 : index
    %26 = vector.load %arg4[%c4, %c0_10] : memref<9x256xf32, #tpu.memory_space<vmem>>, vector<1x256xf32>
    %27 = vector.broadcast %26 : vector<1x256xf32> to vector<8x256xf32>
    %28 = arith.mulf %1, %27 : vector<8x256xf32>
    %29 = vector.extract_strided_slice %1 {offsets = [0, 1], sizes = [8, 255], strides = [1, 1]} : vector<8x256xf32> to vector<8x255xf32>
    %cst_11 = arith.constant 0.000000e+00 : f32
    %30 = vector.broadcast %cst_11 : f32 to vector<8x1xf32>
    %31 = tpu.concatenate %29, %30 in 1 : vector<8x255xf32>, vector<8x1xf32> -> vector<8x256xf32>
    %c5 = arith.constant 5 : index
    %c0_12 = arith.constant 0 : index
    %32 = vector.load %arg4[%c5, %c0_12] : memref<9x256xf32, #tpu.memory_space<vmem>>, vector<1x256xf32>
    %33 = vector.broadcast %32 : vector<1x256xf32> to vector<8x256xf32>
    %34 = arith.mulf %31, %33 : vector<8x256xf32>
    %35 = vector.extract_strided_slice %1 {offsets = [0, 15], sizes = [8, 241], strides = [1, 1]} : vector<8x256xf32> to vector<8x241xf32>
    %cst_13 = arith.constant 0.000000e+00 : f32
    %36 = vector.broadcast %cst_13 : f32 to vector<8x15xf32>
    %37 = tpu.concatenate %35, %36 in 1 : vector<8x241xf32>, vector<8x15xf32> -> vector<8x256xf32>
    %c6 = arith.constant 6 : index
    %c0_14 = arith.constant 0 : index
    %38 = vector.load %arg4[%c6, %c0_14] : memref<9x256xf32, #tpu.memory_space<vmem>>, vector<1x256xf32>
    %39 = vector.broadcast %38 : vector<1x256xf32> to vector<8x256xf32>
    %40 = arith.mulf %37, %39 : vector<8x256xf32>
    %41 = vector.extract_strided_slice %1 {offsets = [0, 16], sizes = [8, 240], strides = [1, 1]} : vector<8x256xf32> to vector<8x240xf32>
    %cst_15 = arith.constant 0.000000e+00 : f32
    %42 = vector.broadcast %cst_15 : f32 to vector<8x16xf32>
    %43 = tpu.concatenate %41, %42 in 1 : vector<8x240xf32>, vector<8x16xf32> -> vector<8x256xf32>
    %c7 = arith.constant 7 : index
    %c0_16 = arith.constant 0 : index
    %44 = vector.load %arg4[%c7, %c0_16] : memref<9x256xf32, #tpu.memory_space<vmem>>, vector<1x256xf32>
    %45 = vector.broadcast %44 : vector<1x256xf32> to vector<8x256xf32>
    %46 = arith.mulf %43, %45 : vector<8x256xf32>
    %47 = vector.extract_strided_slice %1 {offsets = [0, 17], sizes = [8, 239], strides = [1, 1]} : vector<8x256xf32> to vector<8x239xf32>
    %cst_17 = arith.constant 0.000000e+00 : f32
    %48 = vector.broadcast %cst_17 : f32 to vector<8x17xf32>
    %49 = tpu.concatenate %47, %48 in 1 : vector<8x239xf32>, vector<8x17xf32> -> vector<8x256xf32>
    %c8 = arith.constant 8 : index
    %c0_18 = arith.constant 0 : index
    %50 = vector.load %arg4[%c8, %c0_18] : memref<9x256xf32, #tpu.memory_space<vmem>>, vector<1x256xf32>
    %51 = vector.broadcast %50 : vector<1x256xf32> to vector<8x256xf32>
    %52 = arith.mulf %49, %51 : vector<8x256xf32>
    %53 = tpu.concatenate %7, %13, %19, %25, %28, %34, %40, %46, %52 in 0 : vector<8x256xf32>, vector<8x256xf32>, vector<8x256xf32>, vector<8x256xf32>, vector<8x256xf32>, vector<8x256xf32>, vector<8x256xf32>, vector<8x256xf32>, vector<8x256xf32> -> vector<72x256xf32>
    %c0_19 = arith.constant 0 : index
    %c0_20 = arith.constant 0 : index
    %54 = vector.load %arg2[%c0_19, %c0_20] : memref<16x72xf32, #tpu.memory_space<vmem>>, vector<16x72xf32>
    %cst_21 = arith.constant dense<0.000000e+00> : vector<16x256xf32>
    %55 = tpu.matmul %54, %53, %cst_21 {dimension_numbers = #tpu.dot_dimension_numbers<[1], [0], [0], [1], [0, 0, 1, 1], [], []>} : vector<16x72xf32>, vector<72x256xf32>, vector<16x256xf32> -> vector<16x256xf32>
    %c0_22 = arith.constant 0 : index
    %c0_23 = arith.constant 0 : index
    %56 = vector.load %arg3[%c0_22, %c0_23] : memref<16x1xf32, #tpu.memory_space<vmem>>, vector<16x1xf32>
    %57 = vector.broadcast %56 : vector<16x1xf32> to vector<16x256xf32>
    %58 = arith.addf %55, %57 : vector<16x256xf32>
    %cst_24 = arith.constant 0.000000e+00 : f32
    %59 = vector.broadcast %cst_24 : f32 to vector<16x256xf32>
    %60 = arith.maximumf %58, %59 : vector<16x256xf32>
    %61 = vector.extract_strided_slice %60 {offsets = [0, 1], sizes = [16, 255], strides = [1, 1]} : vector<16x256xf32> to vector<16x255xf32>
    %cst_25 = arith.constant 0.000000e+00 : f32
    %62 = vector.broadcast %cst_25 : f32 to vector<16x1xf32>
    %63 = tpu.concatenate %61, %62 in 1 : vector<16x255xf32>, vector<16x1xf32> -> vector<16x256xf32>
    %64 = arith.maximumf %60, %63 : vector<16x256xf32>
    %65 = vector.extract_strided_slice %60 {offsets = [0, 16], sizes = [16, 240], strides = [1, 1]} : vector<16x256xf32> to vector<16x240xf32>
    %cst_26 = arith.constant 0.000000e+00 : f32
    %66 = vector.broadcast %cst_26 : f32 to vector<16x16xf32>
    %67 = tpu.concatenate %65, %66 in 1 : vector<16x240xf32>, vector<16x16xf32> -> vector<16x256xf32>
    %68 = vector.extract_strided_slice %60 {offsets = [0, 17], sizes = [16, 239], strides = [1, 1]} : vector<16x256xf32> to vector<16x239xf32>
    %cst_27 = arith.constant 0.000000e+00 : f32
    %69 = vector.broadcast %cst_27 : f32 to vector<16x17xf32>
    %70 = tpu.concatenate %68, %69 in 1 : vector<16x239xf32>, vector<16x17xf32> -> vector<16x256xf32>
    %71 = arith.maximumf %67, %70 : vector<16x256xf32>
    %72 = arith.maximumf %64, %71 : vector<16x256xf32>
    %c0_28 = arith.constant 0 : index
    %c0_29 = arith.constant 0 : index
    %73 = vector.load %arg5[%c0_28, %c0_29] : memref<256x64xf32, #tpu.memory_space<vmem>>, vector<256x64xf32>
    %cst_30 = arith.constant dense<0.000000e+00> : vector<16x64xf32>
    %74 = tpu.matmul %72, %73, %cst_30 {dimension_numbers = #tpu.dot_dimension_numbers<[1], [0], [0], [1], [0, 0, 1, 1], [], []>} : vector<16x256xf32>, vector<256x64xf32>, vector<16x64xf32> -> vector<16x64xf32>
    %cst_31 = arith.constant 0.000000e+00 : f32
    %75 = vector.broadcast %cst_31 : f32 to vector<16x9xf32>
    %76 = vector.extract_strided_slice %74 {offsets = [0, 0], sizes = [16, 55], strides = [1, 1]} : vector<16x64xf32> to vector<16x55xf32>
    %77 = tpu.concatenate %75, %76 in 1 : vector<16x9xf32>, vector<16x55xf32> -> vector<16x64xf32>
    %c0_32 = arith.constant 0 : index
    %c0_33 = arith.constant 0 : index
    %78 = vector.load %arg8[%c0_32, %c0_33] : memref<9x64xf32, #tpu.memory_space<vmem>>, vector<1x64xf32>
    %79 = vector.broadcast %78 : vector<1x64xf32> to vector<16x64xf32>
    %80 = arith.mulf %77, %79 : vector<16x64xf32>
    %cst_34 = arith.constant 0.000000e+00 : f32
    %81 = vector.broadcast %cst_34 : f32 to vector<16x8xf32>
    %82 = vector.extract_strided_slice %74 {offsets = [0, 0], sizes = [16, 56], strides = [1, 1]} : vector<16x64xf32> to vector<16x56xf32>
    %83 = tpu.concatenate %81, %82 in 1 : vector<16x8xf32>, vector<16x56xf32> -> vector<16x64xf32>
    %c1_35 = arith.constant 1 : index
    %c0_36 = arith.constant 0 : index
    %84 = vector.load %arg8[%c1_35, %c0_36] : memref<9x64xf32, #tpu.memory_space<vmem>>, vector<1x64xf32>
    %85 = vector.broadcast %84 : vector<1x64xf32> to vector<16x64xf32>
    %86 = arith.mulf %83, %85 : vector<16x64xf32>
    %cst_37 = arith.constant 0.000000e+00 : f32
    %87 = vector.broadcast %cst_37 : f32 to vector<16x7xf32>
    %88 = vector.extract_strided_slice %74 {offsets = [0, 0], sizes = [16, 57], strides = [1, 1]} : vector<16x64xf32> to vector<16x57xf32>
    %89 = tpu.concatenate %87, %88 in 1 : vector<16x7xf32>, vector<16x57xf32> -> vector<16x64xf32>
    %c2_38 = arith.constant 2 : index
    %c0_39 = arith.constant 0 : index
    %90 = vector.load %arg8[%c2_38, %c0_39] : memref<9x64xf32, #tpu.memory_space<vmem>>, vector<1x64xf32>
    %91 = vector.broadcast %90 : vector<1x64xf32> to vector<16x64xf32>
    %92 = arith.mulf %89, %91 : vector<16x64xf32>
    %cst_40 = arith.constant 0.000000e+00 : f32
    %93 = vector.broadcast %cst_40 : f32 to vector<16x1xf32>
    %94 = vector.extract_strided_slice %74 {offsets = [0, 0], sizes = [16, 63], strides = [1, 1]} : vector<16x64xf32> to vector<16x63xf32>
    %95 = tpu.concatenate %93, %94 in 1 : vector<16x1xf32>, vector<16x63xf32> -> vector<16x64xf32>
    %c3_41 = arith.constant 3 : index
    %c0_42 = arith.constant 0 : index
    %96 = vector.load %arg8[%c3_41, %c0_42] : memref<9x64xf32, #tpu.memory_space<vmem>>, vector<1x64xf32>
    %97 = vector.broadcast %96 : vector<1x64xf32> to vector<16x64xf32>
    %98 = arith.mulf %95, %97 : vector<16x64xf32>
    %c4_43 = arith.constant 4 : index
    %c0_44 = arith.constant 0 : index
    %99 = vector.load %arg8[%c4_43, %c0_44] : memref<9x64xf32, #tpu.memory_space<vmem>>, vector<1x64xf32>
    %100 = vector.broadcast %99 : vector<1x64xf32> to vector<16x64xf32>
    %101 = arith.mulf %74, %100 : vector<16x64xf32>
    %102 = vector.extract_strided_slice %74 {offsets = [0, 1], sizes = [16, 63], strides = [1, 1]} : vector<16x64xf32> to vector<16x63xf32>
    %cst_45 = arith.constant 0.000000e+00 : f32
    %103 = vector.broadcast %cst_45 : f32 to vector<16x1xf32>
    %104 = tpu.concatenate %102, %103 in 1 : vector<16x63xf32>, vector<16x1xf32> -> vector<16x64xf32>
    %c5_46 = arith.constant 5 : index
    %c0_47 = arith.constant 0 : index
    %105 = vector.load %arg8[%c5_46, %c0_47] : memref<9x64xf32, #tpu.memory_space<vmem>>, vector<1x64xf32>
    %106 = vector.broadcast %105 : vector<1x64xf32> to vector<16x64xf32>
    %107 = arith.mulf %104, %106 : vector<16x64xf32>
    %108 = vector.extract_strided_slice %74 {offsets = [0, 7], sizes = [16, 57], strides = [1, 1]} : vector<16x64xf32> to vector<16x57xf32>
    %cst_48 = arith.constant 0.000000e+00 : f32
    %109 = vector.broadcast %cst_48 : f32 to vector<16x7xf32>
    %110 = tpu.concatenate %108, %109 in 1 : vector<16x57xf32>, vector<16x7xf32> -> vector<16x64xf32>
    %c6_49 = arith.constant 6 : index
    %c0_50 = arith.constant 0 : index
    %111 = vector.load %arg8[%c6_49, %c0_50] : memref<9x64xf32, #tpu.memory_space<vmem>>, vector<1x64xf32>
    %112 = vector.broadcast %111 : vector<1x64xf32> to vector<16x64xf32>
    %113 = arith.mulf %110, %112 : vector<16x64xf32>
    %114 = vector.extract_strided_slice %74 {offsets = [0, 8], sizes = [16, 56], strides = [1, 1]} : vector<16x64xf32> to vector<16x56xf32>
    %cst_51 = arith.constant 0.000000e+00 : f32
    %115 = vector.broadcast %cst_51 : f32 to vector<16x8xf32>
    %116 = tpu.concatenate %114, %115 in 1 : vector<16x56xf32>, vector<16x8xf32> -> vector<16x64xf32>
    %c7_52 = arith.constant 7 : index
    %c0_53 = arith.constant 0 : index
    %117 = vector.load %arg8[%c7_52, %c0_53] : memref<9x64xf32, #tpu.memory_space<vmem>>, vector<1x64xf32>
    %118 = vector.broadcast %117 : vector<1x64xf32> to vector<16x64xf32>
    %119 = arith.mulf %116, %118 : vector<16x64xf32>
    %120 = vector.extract_strided_slice %74 {offsets = [0, 9], sizes = [16, 55], strides = [1, 1]} : vector<16x64xf32> to vector<16x55xf32>
    %cst_54 = arith.constant 0.000000e+00 : f32
    %121 = vector.broadcast %cst_54 : f32 to vector<16x9xf32>
    %122 = tpu.concatenate %120, %121 in 1 : vector<16x55xf32>, vector<16x9xf32> -> vector<16x64xf32>
    %c8_55 = arith.constant 8 : index
    %c0_56 = arith.constant 0 : index
    %123 = vector.load %arg8[%c8_55, %c0_56] : memref<9x64xf32, #tpu.memory_space<vmem>>, vector<1x64xf32>
    %124 = vector.broadcast %123 : vector<1x64xf32> to vector<16x64xf32>
    %125 = arith.mulf %122, %124 : vector<16x64xf32>
    %126 = tpu.concatenate %80, %86, %92, %98, %101, %107, %113, %119, %125 in 0 : vector<16x64xf32>, vector<16x64xf32>, vector<16x64xf32>, vector<16x64xf32>, vector<16x64xf32>, vector<16x64xf32>, vector<16x64xf32>, vector<16x64xf32>, vector<16x64xf32> -> vector<144x64xf32>
    %c0_57 = arith.constant 0 : index
    %c0_58 = arith.constant 0 : index
    %127 = vector.load %arg6[%c0_57, %c0_58] : memref<4x144xf32, #tpu.memory_space<vmem>>, vector<4x144xf32>
    %cst_59 = arith.constant dense<0.000000e+00> : vector<4x64xf32>
    %128 = tpu.matmul %127, %126, %cst_59 {dimension_numbers = #tpu.dot_dimension_numbers<[1], [0], [0], [1], [0, 0, 1, 1], [], []>} : vector<4x144xf32>, vector<144x64xf32>, vector<4x64xf32> -> vector<4x64xf32>
    %c0_60 = arith.constant 0 : index
    %c0_61 = arith.constant 0 : index
    %129 = vector.load %arg7[%c0_60, %c0_61] : memref<4x1xf32, #tpu.memory_space<vmem>>, vector<4x1xf32>
    %130 = vector.broadcast %129 : vector<4x1xf32> to vector<4x64xf32>
    %131 = arith.addf %128, %130 : vector<4x64xf32>
    %cst_62 = arith.constant 0.000000e+00 : f32
    %132 = vector.broadcast %cst_62 : f32 to vector<4x64xf32>
    %133 = arith.maximumf %131, %132 : vector<4x64xf32>
    %134 = vector.extract_strided_slice %133 {offsets = [0, 1], sizes = [4, 63], strides = [1, 1]} : vector<4x64xf32> to vector<4x63xf32>
    %cst_63 = arith.constant 0.000000e+00 : f32
    %135 = vector.broadcast %cst_63 : f32 to vector<4x1xf32>
    %136 = tpu.concatenate %134, %135 in 1 : vector<4x63xf32>, vector<4x1xf32> -> vector<4x64xf32>
    %137 = arith.maximumf %133, %136 : vector<4x64xf32>
    %138 = vector.extract_strided_slice %133 {offsets = [0, 8], sizes = [4, 56], strides = [1, 1]} : vector<4x64xf32> to vector<4x56xf32>
    %cst_64 = arith.constant 0.000000e+00 : f32
    %139 = vector.broadcast %cst_64 : f32 to vector<4x8xf32>
    %140 = tpu.concatenate %138, %139 in 1 : vector<4x56xf32>, vector<4x8xf32> -> vector<4x64xf32>
    %141 = vector.extract_strided_slice %133 {offsets = [0, 9], sizes = [4, 55], strides = [1, 1]} : vector<4x64xf32> to vector<4x55xf32>
    %cst_65 = arith.constant 0.000000e+00 : f32
    %142 = vector.broadcast %cst_65 : f32 to vector<4x9xf32>
    %143 = tpu.concatenate %141, %142 in 1 : vector<4x55xf32>, vector<4x9xf32> -> vector<4x64xf32>
    %144 = arith.maximumf %140, %143 : vector<4x64xf32>
    %145 = arith.maximumf %137, %144 : vector<4x64xf32>
    %c0_66 = arith.constant 0 : index
    %c0_67 = arith.constant 0 : index
    %146 = vector.load %arg9[%c0_66, %c0_67] : memref<64x16xf32, #tpu.memory_space<vmem>>, vector<64x16xf32>
    %cst_68 = arith.constant dense<0.000000e+00> : vector<4x16xf32>
    %147 = tpu.matmul %145, %146, %cst_68 {dimension_numbers = #tpu.dot_dimension_numbers<[1], [0], [0], [1], [0, 0, 1, 1], [], []>} : vector<4x64xf32>, vector<64x16xf32>, vector<4x16xf32> -> vector<4x16xf32>
    %c0_69 = arith.constant 0 : index
    %c0_70 = arith.constant 0 : index
    %c0_71 = arith.constant 0 : index
    %148 = vector.load %arg10[%c0_69, %c0_70, %c0_71] : memref<4x16x4xf32, #tpu.memory_space<vmem>>, vector<1x16x4xf32>
    %149 = vector.shape_cast %148 : vector<1x16x4xf32> to vector<16x4xf32>
    %cst_72 = arith.constant dense<0.000000e+00> : vector<16x16xf32>
    %150 = tpu.matmul %149, %147, %cst_72 {dimension_numbers = #tpu.dot_dimension_numbers<[1], [0], [0], [1], [0, 0, 1, 1], [], []>} : vector<16x4xf32>, vector<4x16xf32>, vector<16x16xf32> -> vector<16x16xf32>
    %c0_73 = arith.constant 0 : index
    %c0_74 = arith.constant 0 : index
    %151 = vector.load %arg11[%c0_73, %c0_74] : memref<16x1xf32, #tpu.memory_space<vmem>>, vector<16x1xf32>
    %152 = vector.broadcast %151 : vector<16x1xf32> to vector<16x16xf32>
    %153 = arith.addf %150, %152 : vector<16x16xf32>
    %cst_75 = arith.constant 0.000000e+00 : f32
    %154 = vector.broadcast %cst_75 : f32 to vector<16x16xf32>
    %155 = arith.maximumf %153, %154 : vector<16x16xf32>
    %c0_76 = arith.constant 0 : index
    %c0_77 = arith.constant 0 : index
    %c0_78 = arith.constant 0 : index
    %156 = vector.load %arg12[%c0_76, %c0_77, %c0_78] : memref<4x16x64xf32, #tpu.memory_space<vmem>>, vector<1x16x64xf32>
    %157 = vector.shape_cast %156 : vector<1x16x64xf32> to vector<16x64xf32>
    %cst_79 = arith.constant dense<0.000000e+00> : vector<16x64xf32>
    %158 = tpu.matmul %155, %157, %cst_79 {dimension_numbers = #tpu.dot_dimension_numbers<[1], [0], [0], [1], [0, 0, 1, 1], [], []>} : vector<16x16xf32>, vector<16x64xf32>, vector<16x64xf32> -> vector<16x64xf32>
    %c1_80 = arith.constant 1 : index
    %c0_81 = arith.constant 0 : index
    %c0_82 = arith.constant 0 : index
    %159 = vector.load %arg10[%c1_80, %c0_81, %c0_82] : memref<4x16x4xf32, #tpu.memory_space<vmem>>, vector<1x16x4xf32>
    %160 = vector.shape_cast %159 : vector<1x16x4xf32> to vector<16x4xf32>
    %cst_83 = arith.constant dense<0.000000e+00> : vector<16x16xf32>
    %161 = tpu.matmul %160, %147, %cst_83 {dimension_numbers = #tpu.dot_dimension_numbers<[1], [0], [0], [1], [0, 0, 1, 1], [], []>} : vector<16x4xf32>, vector<4x16xf32>, vector<16x16xf32> -> vector<16x16xf32>
    %c0_84 = arith.constant 0 : index
    %c0_85 = arith.constant 0 : index
    %162 = vector.load %arg11[%c0_84, %c0_85] : memref<16x1xf32, #tpu.memory_space<vmem>>, vector<16x1xf32>
    %163 = vector.broadcast %162 : vector<16x1xf32> to vector<16x16xf32>
    %164 = arith.addf %161, %163 : vector<16x16xf32>
    %cst_86 = arith.constant 0.000000e+00 : f32
    %165 = vector.broadcast %cst_86 : f32 to vector<16x16xf32>
    %166 = arith.maximumf %164, %165 : vector<16x16xf32>
    %c1_87 = arith.constant 1 : index
    %c0_88 = arith.constant 0 : index
    %c0_89 = arith.constant 0 : index
    %167 = vector.load %arg12[%c1_87, %c0_88, %c0_89] : memref<4x16x64xf32, #tpu.memory_space<vmem>>, vector<1x16x64xf32>
    %168 = vector.shape_cast %167 : vector<1x16x64xf32> to vector<16x64xf32>
    %cst_90 = arith.constant dense<0.000000e+00> : vector<16x64xf32>
    %169 = tpu.matmul %166, %168, %cst_90 {dimension_numbers = #tpu.dot_dimension_numbers<[1], [0], [0], [1], [0, 0, 1, 1], [], []>} : vector<16x16xf32>, vector<16x64xf32>, vector<16x64xf32> -> vector<16x64xf32>
    %170 = arith.addf %158, %169 : vector<16x64xf32>
    %c2_91 = arith.constant 2 : index
    %c0_92 = arith.constant 0 : index
    %c0_93 = arith.constant 0 : index
    %171 = vector.load %arg10[%c2_91, %c0_92, %c0_93] : memref<4x16x4xf32, #tpu.memory_space<vmem>>, vector<1x16x4xf32>
    %172 = vector.shape_cast %171 : vector<1x16x4xf32> to vector<16x4xf32>
    %cst_94 = arith.constant dense<0.000000e+00> : vector<16x16xf32>
    %173 = tpu.matmul %172, %147, %cst_94 {dimension_numbers = #tpu.dot_dimension_numbers<[1], [0], [0], [1], [0, 0, 1, 1], [], []>} : vector<16x4xf32>, vector<4x16xf32>, vector<16x16xf32> -> vector<16x16xf32>
    %c0_95 = arith.constant 0 : index
    %c0_96 = arith.constant 0 : index
    %174 = vector.load %arg11[%c0_95, %c0_96] : memref<16x1xf32, #tpu.memory_space<vmem>>, vector<16x1xf32>
    %175 = vector.broadcast %174 : vector<16x1xf32> to vector<16x16xf32>
    %176 = arith.addf %173, %175 : vector<16x16xf32>
    %cst_97 = arith.constant 0.000000e+00 : f32
    %177 = vector.broadcast %cst_97 : f32 to vector<16x16xf32>
    %178 = arith.maximumf %176, %177 : vector<16x16xf32>
    %c2_98 = arith.constant 2 : index
    %c0_99 = arith.constant 0 : index
    %c0_100 = arith.constant 0 : index
    %179 = vector.load %arg12[%c2_98, %c0_99, %c0_100] : memref<4x16x64xf32, #tpu.memory_space<vmem>>, vector<1x16x64xf32>
    %180 = vector.shape_cast %179 : vector<1x16x64xf32> to vector<16x64xf32>
    %cst_101 = arith.constant dense<0.000000e+00> : vector<16x64xf32>
    %181 = tpu.matmul %178, %180, %cst_101 {dimension_numbers = #tpu.dot_dimension_numbers<[1], [0], [0], [1], [0, 0, 1, 1], [], []>} : vector<16x16xf32>, vector<16x64xf32>, vector<16x64xf32> -> vector<16x64xf32>
    %182 = arith.addf %170, %181 : vector<16x64xf32>
    %c3_102 = arith.constant 3 : index
    %c0_103 = arith.constant 0 : index
    %c0_104 = arith.constant 0 : index
    %183 = vector.load %arg10[%c3_102, %c0_103, %c0_104] : memref<4x16x4xf32, #tpu.memory_space<vmem>>, vector<1x16x4xf32>
    %184 = vector.shape_cast %183 : vector<1x16x4xf32> to vector<16x4xf32>
    %cst_105 = arith.constant dense<0.000000e+00> : vector<16x16xf32>
    %185 = tpu.matmul %184, %147, %cst_105 {dimension_numbers = #tpu.dot_dimension_numbers<[1], [0], [0], [1], [0, 0, 1, 1], [], []>} : vector<16x4xf32>, vector<4x16xf32>, vector<16x16xf32> -> vector<16x16xf32>
    %c0_106 = arith.constant 0 : index
    %c0_107 = arith.constant 0 : index
    %186 = vector.load %arg11[%c0_106, %c0_107] : memref<16x1xf32, #tpu.memory_space<vmem>>, vector<16x1xf32>
    %187 = vector.broadcast %186 : vector<16x1xf32> to vector<16x16xf32>
    %188 = arith.addf %185, %187 : vector<16x16xf32>
    %cst_108 = arith.constant 0.000000e+00 : f32
    %189 = vector.broadcast %cst_108 : f32 to vector<16x16xf32>
    %190 = arith.maximumf %188, %189 : vector<16x16xf32>
    %c3_109 = arith.constant 3 : index
    %c0_110 = arith.constant 0 : index
    %c0_111 = arith.constant 0 : index
    %191 = vector.load %arg12[%c3_109, %c0_110, %c0_111] : memref<4x16x64xf32, #tpu.memory_space<vmem>>, vector<1x16x64xf32>
    %192 = vector.shape_cast %191 : vector<1x16x64xf32> to vector<16x64xf32>
    %cst_112 = arith.constant dense<0.000000e+00> : vector<16x64xf32>
    %193 = tpu.matmul %190, %192, %cst_112 {dimension_numbers = #tpu.dot_dimension_numbers<[1], [0], [0], [1], [0, 0, 1, 1], [], []>} : vector<16x16xf32>, vector<16x64xf32>, vector<16x64xf32> -> vector<16x64xf32>
    %194 = arith.addf %182, %193 : vector<16x64xf32>
    %c0_113 = arith.constant 0 : index
    %c0_114 = arith.constant 0 : index
    %c0_115 = arith.constant 0 : index
    %195 = vector.load %arg13[%c0_113, %c0_114, %c0_115] : memref<4x3x16xf32, #tpu.memory_space<vmem>>, vector<1x3x16xf32>
    %196 = vector.shape_cast %195 : vector<1x3x16xf32> to vector<3x16xf32>
    %cst_116 = arith.constant dense<0.000000e+00> : vector<3x64xf32>
    %197 = tpu.matmul %196, %194, %cst_116 {dimension_numbers = #tpu.dot_dimension_numbers<[1], [0], [0], [1], [0, 0, 1, 1], [], []>} : vector<3x16xf32>, vector<16x64xf32>, vector<3x64xf32> -> vector<3x64xf32>
    %c0_117 = arith.constant 0 : index
    %c0_118 = arith.constant 0 : index
    %198 = vector.load %arg14[%c0_117, %c0_118] : memref<3x1xf32, #tpu.memory_space<vmem>>, vector<3x1xf32>
    %199 = vector.broadcast %198 : vector<3x1xf32> to vector<3x64xf32>
    %200 = arith.addf %197, %199 : vector<3x64xf32>
    %cst_119 = arith.constant 5.000000e-01 : f32
    %201 = vector.broadcast %cst_119 : f32 to vector<3x64xf32>
    %202 = arith.mulf %201, %200 : vector<3x64xf32>
    %203 = math.tanh %202 : vector<3x64xf32>
    %cst_120 = arith.constant 1.000000e+00 : f32
    %204 = vector.broadcast %cst_120 : f32 to vector<3x64xf32>
    %205 = arith.addf %203, %204 : vector<3x64xf32>
    %cst_121 = arith.constant 5.000000e-01 : f32
    %206 = vector.broadcast %cst_121 : f32 to vector<3x64xf32>
    %207 = arith.mulf %206, %205 : vector<3x64xf32>
    %c0_122 = arith.constant 0 : index
    %c0_123 = arith.constant 0 : index
    %c0_124 = arith.constant 0 : index
    %208 = vector.load %arg15[%c0_122, %c0_123, %c0_124] : memref<4x64x256xf32, #tpu.memory_space<vmem>>, vector<1x64x256xf32>
    %209 = vector.shape_cast %208 : vector<1x64x256xf32> to vector<64x256xf32>
    %cst_125 = arith.constant dense<0.000000e+00> : vector<3x256xf32>
    %210 = tpu.matmul %207, %209, %cst_125 {dimension_numbers = #tpu.dot_dimension_numbers<[1], [0], [0], [1], [0, 0, 1, 1], [], []>} : vector<3x64xf32>, vector<64x256xf32>, vector<3x256xf32> -> vector<3x256xf32>
    %c1_126 = arith.constant 1 : index
    %c0_127 = arith.constant 0 : index
    %c0_128 = arith.constant 0 : index
    %211 = vector.load %arg13[%c1_126, %c0_127, %c0_128] : memref<4x3x16xf32, #tpu.memory_space<vmem>>, vector<1x3x16xf32>
    %212 = vector.shape_cast %211 : vector<1x3x16xf32> to vector<3x16xf32>
    %cst_129 = arith.constant dense<0.000000e+00> : vector<3x64xf32>
    %213 = tpu.matmul %212, %194, %cst_129 {dimension_numbers = #tpu.dot_dimension_numbers<[1], [0], [0], [1], [0, 0, 1, 1], [], []>} : vector<3x16xf32>, vector<16x64xf32>, vector<3x64xf32> -> vector<3x64xf32>
    %c0_130 = arith.constant 0 : index
    %c0_131 = arith.constant 0 : index
    %214 = vector.load %arg14[%c0_130, %c0_131] : memref<3x1xf32, #tpu.memory_space<vmem>>, vector<3x1xf32>
    %215 = vector.broadcast %214 : vector<3x1xf32> to vector<3x64xf32>
    %216 = arith.addf %213, %215 : vector<3x64xf32>
    %cst_132 = arith.constant 5.000000e-01 : f32
    %217 = vector.broadcast %cst_132 : f32 to vector<3x64xf32>
    %218 = arith.mulf %217, %216 : vector<3x64xf32>
    %219 = math.tanh %218 : vector<3x64xf32>
    %cst_133 = arith.constant 1.000000e+00 : f32
    %220 = vector.broadcast %cst_133 : f32 to vector<3x64xf32>
    %221 = arith.addf %219, %220 : vector<3x64xf32>
    %cst_134 = arith.constant 5.000000e-01 : f32
    %222 = vector.broadcast %cst_134 : f32 to vector<3x64xf32>
    %223 = arith.mulf %222, %221 : vector<3x64xf32>
    %c1_135 = arith.constant 1 : index
    %c0_136 = arith.constant 0 : index
    %c0_137 = arith.constant 0 : index
    %224 = vector.load %arg15[%c1_135, %c0_136, %c0_137] : memref<4x64x256xf32, #tpu.memory_space<vmem>>, vector<1x64x256xf32>
    %225 = vector.shape_cast %224 : vector<1x64x256xf32> to vector<64x256xf32>
    %cst_138 = arith.constant dense<0.000000e+00> : vector<3x256xf32>
    %226 = tpu.matmul %223, %225, %cst_138 {dimension_numbers = #tpu.dot_dimension_numbers<[1], [0], [0], [1], [0, 0, 1, 1], [], []>} : vector<3x64xf32>, vector<64x256xf32>, vector<3x256xf32> -> vector<3x256xf32>
    %227 = arith.addf %210, %226 : vector<3x256xf32>
    %c2_139 = arith.constant 2 : index
    %c0_140 = arith.constant 0 : index
    %c0_141 = arith.constant 0 : index
    %228 = vector.load %arg13[%c2_139, %c0_140, %c0_141] : memref<4x3x16xf32, #tpu.memory_space<vmem>>, vector<1x3x16xf32>
    %229 = vector.shape_cast %228 : vector<1x3x16xf32> to vector<3x16xf32>
    %cst_142 = arith.constant dense<0.000000e+00> : vector<3x64xf32>
    %230 = tpu.matmul %229, %194, %cst_142 {dimension_numbers = #tpu.dot_dimension_numbers<[1], [0], [0], [1], [0, 0, 1, 1], [], []>} : vector<3x16xf32>, vector<16x64xf32>, vector<3x64xf32> -> vector<3x64xf32>
    %c0_143 = arith.constant 0 : index
    %c0_144 = arith.constant 0 : index
    %231 = vector.load %arg14[%c0_143, %c0_144] : memref<3x1xf32, #tpu.memory_space<vmem>>, vector<3x1xf32>
    %232 = vector.broadcast %231 : vector<3x1xf32> to vector<3x64xf32>
    %233 = arith.addf %230, %232 : vector<3x64xf32>
    %cst_145 = arith.constant 5.000000e-01 : f32
    %234 = vector.broadcast %cst_145 : f32 to vector<3x64xf32>
    %235 = arith.mulf %234, %233 : vector<3x64xf32>
    %236 = math.tanh %235 : vector<3x64xf32>
    %cst_146 = arith.constant 1.000000e+00 : f32
    %237 = vector.broadcast %cst_146 : f32 to vector<3x64xf32>
    %238 = arith.addf %236, %237 : vector<3x64xf32>
    %cst_147 = arith.constant 5.000000e-01 : f32
    %239 = vector.broadcast %cst_147 : f32 to vector<3x64xf32>
    %240 = arith.mulf %239, %238 : vector<3x64xf32>
    %c2_148 = arith.constant 2 : index
    %c0_149 = arith.constant 0 : index
    %c0_150 = arith.constant 0 : index
    %241 = vector.load %arg15[%c2_148, %c0_149, %c0_150] : memref<4x64x256xf32, #tpu.memory_space<vmem>>, vector<1x64x256xf32>
    %242 = vector.shape_cast %241 : vector<1x64x256xf32> to vector<64x256xf32>
    %cst_151 = arith.constant dense<0.000000e+00> : vector<3x256xf32>
    %243 = tpu.matmul %240, %242, %cst_151 {dimension_numbers = #tpu.dot_dimension_numbers<[1], [0], [0], [1], [0, 0, 1, 1], [], []>} : vector<3x64xf32>, vector<64x256xf32>, vector<3x256xf32> -> vector<3x256xf32>
    %244 = arith.addf %227, %243 : vector<3x256xf32>
    %c3_152 = arith.constant 3 : index
    %c0_153 = arith.constant 0 : index
    %c0_154 = arith.constant 0 : index
    %245 = vector.load %arg13[%c3_152, %c0_153, %c0_154] : memref<4x3x16xf32, #tpu.memory_space<vmem>>, vector<1x3x16xf32>
    %246 = vector.shape_cast %245 : vector<1x3x16xf32> to vector<3x16xf32>
    %cst_155 = arith.constant dense<0.000000e+00> : vector<3x64xf32>
    %247 = tpu.matmul %246, %194, %cst_155 {dimension_numbers = #tpu.dot_dimension_numbers<[1], [0], [0], [1], [0, 0, 1, 1], [], []>} : vector<3x16xf32>, vector<16x64xf32>, vector<3x64xf32> -> vector<3x64xf32>
    %c0_156 = arith.constant 0 : index
    %c0_157 = arith.constant 0 : index
    %248 = vector.load %arg14[%c0_156, %c0_157] : memref<3x1xf32, #tpu.memory_space<vmem>>, vector<3x1xf32>
    %249 = vector.broadcast %248 : vector<3x1xf32> to vector<3x64xf32>
    %250 = arith.addf %247, %249 : vector<3x64xf32>
    %cst_158 = arith.constant 5.000000e-01 : f32
    %251 = vector.broadcast %cst_158 : f32 to vector<3x64xf32>
    %252 = arith.mulf %251, %250 : vector<3x64xf32>
    %253 = math.tanh %252 : vector<3x64xf32>
    %cst_159 = arith.constant 1.000000e+00 : f32
    %254 = vector.broadcast %cst_159 : f32 to vector<3x64xf32>
    %255 = arith.addf %253, %254 : vector<3x64xf32>
    %cst_160 = arith.constant 5.000000e-01 : f32
    %256 = vector.broadcast %cst_160 : f32 to vector<3x64xf32>
    %257 = arith.mulf %256, %255 : vector<3x64xf32>
    %c3_161 = arith.constant 3 : index
    %c0_162 = arith.constant 0 : index
    %c0_163 = arith.constant 0 : index
    %258 = vector.load %arg15[%c3_161, %c0_162, %c0_163] : memref<4x64x256xf32, #tpu.memory_space<vmem>>, vector<1x64x256xf32>
    %259 = vector.shape_cast %258 : vector<1x64x256xf32> to vector<64x256xf32>
    %cst_164 = arith.constant dense<0.000000e+00> : vector<3x256xf32>
    %260 = tpu.matmul %257, %259, %cst_164 {dimension_numbers = #tpu.dot_dimension_numbers<[1], [0], [0], [1], [0, 0, 1, 1], [], []>} : vector<3x64xf32>, vector<64x256xf32>, vector<3x256xf32> -> vector<3x256xf32>
    %261 = arith.addf %244, %260 : vector<3x256xf32>
    %c0_165 = arith.constant 0 : index
    %c0_166 = arith.constant 0 : index
    %c0_167 = arith.constant 0 : index
    %262 = vector.load %arg16[%c0_165, %c0_166, %c0_167] : memref<1x3x256xf32, #tpu.memory_space<vmem>>, vector<1x3x256xf32>
    %263 = vector.shape_cast %262 : vector<1x3x256xf32> to vector<3x256xf32>
    %264 = vector.shape_cast %261 : vector<3x256xf32> to vector<1x3x256xf32>
    tpu.vector_store %arg16[%c0_165, %c0_166, %c0_167], %264 {strides = array<i32>} : memref<1x3x256xf32, #tpu.memory_space<vmem>>, vector<1x3x256xf32>,
    return
  }
  func.func @transform_0(%arg0: i32) -> (i32, i32, i32) {
    %c0_i32 = arith.constant 0 : i32
    %c0_i32_0 = arith.constant 0 : i32
    %c0_i32_1 = arith.constant 0 : i32
    return %arg0, %c0_i32, %c0_i32_0 : i32, i32, i32
  }
  func.func @transform_1(%arg0: i32) -> (i32, i32) {
    %c0_i32 = arith.constant 0 : i32
    %c0_i32_0 = arith.constant 0 : i32
    %c0_i32_1 = arith.constant 0 : i32
    return %c0_i32, %c0_i32_0 : i32, i32
  }
  func.func @transform_2(%arg0: i32) -> (i32, i32) {
    %c0_i32 = arith.constant 0 : i32
    %c0_i32_0 = arith.constant 0 : i32
    %c0_i32_1 = arith.constant 0 : i32
    return %c0_i32, %c0_i32_0 : i32, i32
  }
  func.func @transform_3(%arg0: i32) -> (i32, i32) {
    %c0_i32 = arith.constant 0 : i32
    %c0_i32_0 = arith.constant 0 : i32
    %c0_i32_1 = arith.constant 0 : i32
    return %c0_i32, %c0_i32_0 : i32, i32
  }
  func.func @transform_4(%arg0: i32) -> (i32, i32) {
    %c0_i32 = arith.constant 0 : i32
    %c0_i32_0 = arith.constant 0 : i32
    %c0_i32_1 = arith.constant 0 : i32
    return %c0_i32, %c0_i32_0 : i32, i32
  }
  func.func @transform_5(%arg0: i32) -> (i32, i32) {
    %c0_i32 = arith.constant 0 : i32
    %c0_i32_0 = arith.constant 0 : i32
    %c0_i32_1 = arith.constant 0 : i32
    return %c0_i32, %c0_i32_0 : i32, i32
  }
  func.func @transform_6(%arg0: i32) -> (i32, i32) {
    %c0_i32 = arith.constant 0 : i32
    %c0_i32_0 = arith.constant 0 : i32
    %c0_i32_1 = arith.constant 0 : i32
    return %c0_i32, %c0_i32_0 : i32, i32
  }
  func.func @transform_7(%arg0: i32) -> (i32, i32) {
    %c0_i32 = arith.constant 0 : i32
    %c0_i32_0 = arith.constant 0 : i32
    %c0_i32_1 = arith.constant 0 : i32
    return %c0_i32, %c0_i32_0 : i32, i32
  }
  func.func @transform_8(%arg0: i32) -> (i32, i32) {
    %c0_i32 = arith.constant 0 : i32
    %c0_i32_0 = arith.constant 0 : i32
    %c0_i32_1 = arith.constant 0 : i32
    return %c0_i32, %c0_i32_0 : i32, i32
  }
  func.func @transform_9(%arg0: i32) -> (i32, i32, i32) {
    %c0_i32 = arith.constant 0 : i32
    %c0_i32_0 = arith.constant 0 : i32
    %c0_i32_1 = arith.constant 0 : i32
    %c0_i32_2 = arith.constant 0 : i32
    return %c0_i32, %c0_i32_0, %c0_i32_1 : i32, i32, i32
  }
  func.func @transform_10(%arg0: i32) -> (i32, i32) {
    %c0_i32 = arith.constant 0 : i32
    %c0_i32_0 = arith.constant 0 : i32
    %c0_i32_1 = arith.constant 0 : i32
    return %c0_i32, %c0_i32_0 : i32, i32
  }
  func.func @transform_11(%arg0: i32) -> (i32, i32, i32) {
    %c0_i32 = arith.constant 0 : i32
    %c0_i32_0 = arith.constant 0 : i32
    %c0_i32_1 = arith.constant 0 : i32
    %c0_i32_2 = arith.constant 0 : i32
    return %c0_i32, %c0_i32_0, %c0_i32_1 : i32, i32, i32
  }
  func.func @transform_12(%arg0: i32) -> (i32, i32, i32) {
    %c0_i32 = arith.constant 0 : i32
    %c0_i32_0 = arith.constant 0 : i32
    %c0_i32_1 = arith.constant 0 : i32
    %c0_i32_2 = arith.constant 0 : i32
    return %c0_i32, %c0_i32_0, %c0_i32_1 : i32, i32, i32
  }
  func.func @transform_13(%arg0: i32) -> (i32, i32) {
    %c0_i32 = arith.constant 0 : i32
    %c0_i32_0 = arith.constant 0 : i32
    %c0_i32_1 = arith.constant 0 : i32
    return %c0_i32, %c0_i32_0 : i32, i32
  }
  func.func @transform_14(%arg0: i32) -> (i32, i32, i32) {
    %c0_i32 = arith.constant 0 : i32
    %c0_i32_0 = arith.constant 0 : i32
    %c0_i32_1 = arith.constant 0 : i32
    %c0_i32_2 = arith.constant 0 : i32
    return %c0_i32, %c0_i32_0, %c0_i32_1 : i32, i32, i32
  }
  func.func @transform_15(%arg0: i32) -> (i32, i32, i32) {
    %c0_i32 = arith.constant 0 : i32
    %c0_i32_0 = arith.constant 0 : i32
    %c0_i32_1 = arith.constant 0 : i32
    return %arg0, %c0_i32, %c0_i32_0 : i32, i32, i32
  }
}

</mosaic_0001>

<llo_original>
// kernel: tpu_custom_call.1
$region0: #{tpu_custom_call.1}
  #allocation0 [shape = 'u32[]', space=smem, size = 0x4, offset = 0x4, fixed_abs, tag = 'smem constant byte address 0x4 - core index']
  #allocation1 [shape = 'u32[72,128]{1,0:T(1,128)}', space=vmem, size = 0x9000, scoped, tag = 'internal scratch']
  %s0 = inlined_call_operand.vmem [shape: f32[2,8,256], index: 0, kind: input, shape index: {}]
  %s1 = inlined_call_operand.vmem [shape: f32[16,72], index: 1, kind: input, shape index: {}]
  %s2 = inlined_call_operand.vmem [shape: f32[16,1], index: 2, kind: input, shape index: {}]
  %s3 = inlined_call_operand.vmem [shape: f32[9,256], index: 3, kind: input, shape index: {}]
  %s4 = inlined_call_operand.vmem [shape: f32[256,64], index: 4, kind: input, shape index: {}]
  %s5 = inlined_call_operand.vmem [shape: f32[4,144], index: 5, kind: input, shape index: {}]
  %s6 = inlined_call_operand.vmem [shape: f32[4,1], index: 6, kind: input, shape index: {}]
  %s7 = inlined_call_operand.vmem [shape: f32[9,64], index: 7, kind: input, shape index: {}]
  %s8 = inlined_call_operand.vmem [shape: f32[64,16], index: 8, kind: input, shape index: {}]
  %s9 = inlined_call_operand.vmem [shape: f32[4,16,4], index: 9, kind: input, shape index: {}]
  %s10 = inlined_call_operand.vmem [shape: f32[16,1], index: 10, kind: input, shape index: {}]
  %s11 = inlined_call_operand.vmem [shape: f32[4,16,64], index: 11, kind: input, shape index: {}]
  %s12 = inlined_call_operand.vmem [shape: f32[4,3,16], index: 12, kind: input, shape index: {}]
  %s13 = inlined_call_operand.vmem [shape: f32[3,1], index: 13, kind: input, shape index: {}]
  %s14 = inlined_call_operand.hbm [shape: f32[4,64,256], index: 14, kind: input, shape index: {}]
  %s15 = inlined_call_operand.vmem [shape: f32[2,3,256], index: 15, kind: output, shape index: {}]
  %s16 = sld [smem:[#allocation0]]
  $region97: #{tpu_custom_call.1} parent=0
    _
  %s18 = ssub.s32 1, %s16
  %s19 = scalar_select 0, %s18, %s16
  $region1: #{tpu_custom_call.1} parent=0
    #allocation2 [shape = 'u8[262144]{0}', space=vmem, size = 0x40000, scoped, tag = 'input window, operand 14, single buffered']
    #allocation3 [shape = 's32[2]{0}', space=sflag, size = 0x8, scoped, tag = 'scoped memory for tpu_custom_call.1']
    %20 = vsyncpa [#allocation3], 0
    loop: start=0, step=1, limit=4
    $region2: #{tpu_custom_call.1} parent=1 // loop_pre_header
      _
    $region3: #{tpu_custom_call.1} parent=1 // loop_header
      %s22 = sphi 0, %s26
      %p23 = scmp.ge.s32.totalorder %s22, 4
      %s32 = sphi 0, %s34
      %s35 = sphi 0, %s32
      %s36 = sphi 0, %s35
      %s52 = sphi 0, %s36
      %s56 = sphi 0, %s56
      %s58 = sphi 0, %s56
      %s59 = sphi 0, %s58
      %s73 = sphi 0, %s59
      %s77 = sphi 0, %s77
      %s79 = sphi 0, %s77
      %s80 = sphi 0, %s79
      %s94 = sphi 0, %s80
      %s98 = sphi 0, %s98
      %s100 = sphi 0, %s98
      %s101 = sphi 0, %s100
      %s115 = sphi 0, %s101
      %s119 = sphi 0, %s119
      %s121 = sphi 0, %s119
      %s122 = sphi 0, %s121
      %s136 = sphi 0, %s122
      %s140 = sphi 0, %s140
      %s142 = sphi 0, %s140
      %s143 = sphi 0, %s142
      %s157 = sphi 0, %s143
      %s161 = sphi 0, %s161
      %s163 = sphi 0, %s161
      %s164 = sphi 0, %s163
      %s178 = sphi 0, %s164
      %s182 = sphi 0, %s182
      %s184 = sphi 0, %s182
      %s185 = sphi 0, %s184
      %s199 = sphi 0, %s185
      %s203 = sphi 0, %s203
      %s205 = sphi 0, %s203
      %s206 = sphi 0, %s205
      %s220 = sphi 0, %s206
      %s224 = sphi 0, %s224
      %s226 = sphi 0, %s224
      %s227 = sphi 0, %s226
      %s241 = sphi 0, %s227
      %s245 = sphi 0, %s245
      %s247 = sphi 0, %s245
      %s248 = sphi 0, %s247
      %s262 = sphi 0, %s248
      %s266 = sphi 0, %s266
      %s268 = sphi 0, %s266
      %s269 = sphi 0, %s268
      %s283 = sphi 0, %s269
      %s287 = sphi 0, %s287
      %s289 = sphi 0, %s287
      %s290 = sphi 0, %s289
      %s304 = sphi 0, %s290
      %s308 = sphi 0, %s308
      %s310 = sphi 0, %s308
      %s311 = sphi 0, %s310
      %s325 = sphi 0, %s311
      %s329 = sphi 0, %s329
      %s331 = sphi 0, %s329
      %s332 = sphi 0, %s331
      %s346 = sphi 0, %s332
      %s352 = sphi 0, %s354
      %s355 = sphi 0, %s352
      %s356 = sphi 0, %s355
      %s372 = sphi 0, %s356
    $region4: #{tpu_custom_call.1} parent=1 // loop_header_branch
      %25 = sbr.rel (%p23) target = $region8
    $region5: #{tpu_custom_call.1} parent=1 // loop_body
      %s27 = ssub.s32 %s22, 1
      %s28 = ssub.s32 %s22, 2
      %s29 = sadd.s32 %s22, 1
      %s30 = ssub.s32 %s22, %s29
      %p31 = scmp.eq.s32.totalorder %s30, 0
      %s33 = sadd.s32 %s32, 1
      %s34 = scalar_select %p31, %s32, %s33
      %p37 = pneg %p31
      %p38 = scmp.eq.s32.totalorder %s22, 1
      %p39 = por %p37, %p38
      %p40 = scmp.ne.s32.totalorder %s32, %s35
      %p41 = scmp.eq.s32.totalorder %s22, 0
      %p42 = por %p40, %p41
      %p43 = scmp.ne.s32.totalorder %s32, %s35
      %p44 = scmp.eq.s32.totalorder %s27, 1
      %p45 = por %p43, %p44
      %p46 = scmp.ne.s32.totalorder %s35, %s36
      %p47 = scmp.eq.s32.totalorder %s27, 0
      %p48 = por %p46, %p47
      %p49 = scmp.ne.s32.totalorder %s35, %s36
      %p50 = scmp.eq.s32.totalorder %s28, 1
      %p51 = por %p49, %p50
      %p53 = scmp.ne.s32.totalorder %s36, %s52
      %p54 = scmp.eq.s32.totalorder %s28, 0
      %p55 = por %p53, %p54
      %s57 = sadd.s32 %s56, 1
      %p60 = scmp.eq.s32.totalorder %s22, 1
      %p61 = scmp.ne.s32.totalorder %s56, %s58
      %p62 = scmp.eq.s32.totalorder %s22, 0
      %p63 = por %p61, %p62
      %p64 = scmp.ne.s32.totalorder %s56, %s58
      %p65 = scmp.eq.s32.totalorder %s27, 1
      %p66 = por %p64, %p65
      %p67 = scmp.ne.s32.totalorder %s58, %s59
      %p68 = scmp.eq.s32.totalorder %s27, 0
      %p69 = por %p67, %p68
      %p70 = scmp.ne.s32.totalorder %s58, %s59
      %p71 = scmp.eq.s32.totalorder %s28, 1
      %p72 = por %p70, %p71
      %p74 = scmp.ne.s32.totalorder %s59, %s73
      %p75 = scmp.eq.s32.totalorder %s28, 0
      %p76 = por %p74, %p75
      %s78 = sadd.s32 %s77, 1
      %p81 = scmp.eq.s32.totalorder %s22, 1
      %p82 = scmp.ne.s32.totalorder %s77, %s79
      %p83 = scmp.eq.s32.totalorder %s22, 0
      %p84 = por %p82, %p83
      %p85 = scmp.ne.s32.totalorder %s77, %s79
      %p86 = scmp.eq.s32.totalorder %s27, 1
      %p87 = por %p85, %p86
      %p88 = scmp.ne.s32.totalorder %s79, %s80
      %p89 = scmp.eq.s32.totalorder %s27, 0
      %p90 = por %p88, %p89
      %p91 = scmp.ne.s32.totalorder %s79, %s80
      %p92 = scmp.eq.s32.totalorder %s28, 1
      %p93 = por %p91, %p92
      %p95 = scmp.ne.s32.totalorder %s80, %s94
      %p96 = scmp.eq.s32.totalorder %s28, 0
      %p97 = por %p95, %p96
      %s99 = sadd.s32 %s98, 1
      %p102 = scmp.eq.s32.totalorder %s22, 1
      %p103 = scmp.ne.s32.totalorder %s98, %s100
      %p104 = scmp.eq.s32.totalorder %s22, 0
      %p105 = por %p103, %p104
      %p106 = scmp.ne.s32.totalorder %s98, %s100
      %p107 = scmp.eq.s32.totalorder %s27, 1
      %p108 = por %p106, %p107
      %p109 = scmp.ne.s32.totalorder %s100, %s101
      %p110 = scmp.eq.s32.totalorder %s27, 0
      %p111 = por %p109, %p110
      %p112 = scmp.ne.s32.totalorder %s100, %s101
      %p113 = scmp.eq.s32.totalorder %s28, 1
      %p114 = por %p112, %p113
      %p116 = scmp.ne.s32.totalorder %s101, %s115
      %p117 = scmp.eq.s32.totalorder %s28, 0
      %p118 = por %p116, %p117
      %s120 = sadd.s32 %s119, 1
      %p123 = scmp.eq.s32.totalorder %s22, 1
      %p124 = scmp.ne.s32.totalorder %s119, %s121
      %p125 = scmp.eq.s32.totalorder %s22, 0
      %p126 = por %p124, %p125
      %p127 = scmp.ne.s32.totalorder %s119, %s121
      %p128 = scmp.eq.s32.totalorder %s27, 1
      %p129 = por %p127, %p128
      %p130 = scmp.ne.s32.totalorder %s121, %s122
      %p131 = scmp.eq.s32.totalorder %s27, 0
      %p132 = por %p130, %p131
      %p133 = scmp.ne.s32.totalorder %s121, %s122
      %p134 = scmp.eq.s32.totalorder %s28, 1
      %p135 = por %p133, %p134
      %p137 = scmp.ne.s32.totalorder %s122, %s136
      %p138 = scmp.eq.s32.totalorder %s28, 0
      %p139 = por %p137, %p138
      %s141 = sadd.s32 %s140, 1
      %p144 = scmp.eq.s32.totalorder %s22, 1
      %p145 = scmp.ne.s32.totalorder %s140, %s142
      %p146 = scmp.eq.s32.totalorder %s22, 0
      %p147 = por %p145, %p146
      %p148 = scmp.ne.s32.totalorder %s140, %s142
      %p149 = scmp.eq.s32.totalorder %s27, 1
      %p150 = por %p148, %p149
      %p151 = scmp.ne.s32.totalorder %s142, %s143
      %p152 = scmp.eq.s32.totalorder %s27, 0
      %p153 = por %p151, %p152
      %p154 = scmp.ne.s32.totalorder %s142, %s143
      %p155 = scmp.eq.s32.totalorder %s28, 1
      %p156 = por %p154, %p155
      %p158 = scmp.ne.s32.totalorder %s143, %s157
      %p159 = scmp.eq.s32.totalorder %s28, 0
      %p160 = por %p158, %p159
      %s162 = sadd.s32 %s161, 1
      %p165 = scmp.eq.s32.totalorder %s22, 1
      %p166 = scmp.ne.s32.totalorder %s161, %s163
      %p167 = scmp.eq.s32.totalorder %s22, 0
      %p168 = por %p166, %p167
      %p169 = scmp.ne.s32.totalorder %s161, %s163
      %p170 = scmp.eq.s32.totalorder %s27, 1
      %p171 = por %p169, %p170
      %p172 = scmp.ne.s32.totalorder %s163, %s164
      %p173 = scmp.eq.s32.totalorder %s27, 0
      %p174 = por %p172, %p173
      %p175 = scmp.ne.s32.totalorder %s163, %s164
      %p176 = scmp.eq.s32.totalorder %s28, 1
      %p177 = por %p175, %p176
      %p179 = scmp.ne.s32.totalorder %s164, %s178
      %p180 = scmp.eq.s32.totalorder %s28, 0
      %p181 = por %p179, %p180
      %s183 = sadd.s32 %s182, 1
      %p186 = scmp.eq.s32.totalorder %s22, 1
      %p187 = scmp.ne.s32.totalorder %s182, %s184
      %p188 = scmp.eq.s32.totalorder %s22, 0
      %p189 = por %p187, %p188
      %p190 = scmp.ne.s32.totalorder %s182, %s184
      %p191 = scmp.eq.s32.totalorder %s27, 1
      %p192 = por %p190, %p191
      %p193 = scmp.ne.s32.totalorder %s184, %s185
      %p194 = scmp.eq.s32.totalorder %s27, 0
      %p195 = por %p193, %p194
      %p196 = scmp.ne.s32.totalorder %s184, %s185
      %p197 = scmp.eq.s32.totalorder %s28, 1
      %p198 = por %p196, %p197
      %p200 = scmp.ne.s32.totalorder %s185, %s199
      %p201 = scmp.eq.s32.totalorder %s28, 0
      %p202 = por %p200, %p201
      %s204 = sadd.s32 %s203, 1
      %p207 = scmp.eq.s32.totalorder %s22, 1
      %p208 = scmp.ne.s32.totalorder %s203, %s205
      %p209 = scmp.eq.s32.totalorder %s22, 0
      %p210 = por %p208, %p209
      %p211 = scmp.ne.s32.totalorder %s203, %s205
      %p212 = scmp.eq.s32.totalorder %s27, 1
      %p213 = por %p211, %p212
      %p214 = scmp.ne.s32.totalorder %s205, %s206
      %p215 = scmp.eq.s32.totalorder %s27, 0
      %p216 = por %p214, %p215
      %p217 = scmp.ne.s32.totalorder %s205, %s206
      %p218 = scmp.eq.s32.totalorder %s28, 1
      %p219 = por %p217, %p218
      %p221 = scmp.ne.s32.totalorder %s206, %s220
      %p222 = scmp.eq.s32.totalorder %s28, 0
      %p223 = por %p221, %p222
      %s225 = sadd.s32 %s224, 1
      %p228 = scmp.eq.s32.totalorder %s22, 1
      %p229 = scmp.ne.s32.totalorder %s224, %s226
      %p230 = scmp.eq.s32.totalorder %s22, 0
      %p231 = por %p229, %p230
      %p232 = scmp.ne.s32.totalorder %s224, %s226
      %p233 = scmp.eq.s32.totalorder %s27, 1
      %p234 = por %p232, %p233
      %p235 = scmp.ne.s32.totalorder %s226, %s227
      %p236 = scmp.eq.s32.totalorder %s27, 0
      %p237 = por %p235, %p236
      %p238 = scmp.ne.s32.totalorder %s226, %s227
      %p239 = scmp.eq.s32.totalorder %s28, 1
      %p240 = por %p238, %p239
      %p242 = scmp.ne.s32.totalorder %s227, %s241
      %p243 = scmp.eq.s32.totalorder %s28, 0
      %p244 = por %p242, %p243
      %s246 = sadd.s32 %s245, 1
      %p249 = scmp.eq.s32.totalorder %s22, 1
      %p250 = scmp.ne.s32.totalorder %s245, %s247
      %p251 = scmp.eq.s32.totalorder %s22, 0
      %p252 = por %p250, %p251
      %p253 = scmp.ne.s32.totalorder %s245, %s247
      %p254 = scmp.eq.s32.totalorder %s27, 1
      %p255 = por %p253, %p254
      %p256 = scmp.ne.s32.totalorder %s247, %s248
      %p257 = scmp.eq.s32.totalorder %s27, 0
      %p258 = por %p256, %p257
      %p259 = scmp.ne.s32.totalorder %s247, %s248
      %p260 = scmp.eq.s32.totalorder %s28, 1
      %p261 = por %p259, %p260
      %p263 = scmp.ne.s32.totalorder %s248, %s262
      %p264 = scmp.eq.s32.totalorder %s28, 0
      %p265 = por %p263, %p264
      %s267 = sadd.s32 %s266, 1
      %p270 = scmp.eq.s32.totalorder %s22, 1
      %p271 = scmp.ne.s32.totalorder %s266, %s268
      %p272 = scmp.eq.s32.totalorder %s22, 0
      %p273 = por %p271, %p272
      %p274 = scmp.ne.s32.totalorder %s266, %s268
      %p275 = scmp.eq.s32.totalorder %s27, 1
      %p276 = por %p274, %p275
      %p277 = scmp.ne.s32.totalorder %s268, %s269
      %p278 = scmp.eq.s32.totalorder %s27, 0
      %p279 = por %p277, %p278
      %p280 = scmp.ne.s32.totalorder %s268, %s269
      %p281 = scmp.eq.s32.totalorder %s28, 1
      %p282 = por %p280, %p281
      %p284 = scmp.ne.s32.totalorder %s269, %s283
      %p285 = scmp.eq.s32.totalorder %s28, 0
      %p286 = por %p284, %p285
      %s288 = sadd.s32 %s287, 1
      %p291 = scmp.eq.s32.totalorder %s22, 1
      %p292 = scmp.ne.s32.totalorder %s287, %s289
      %p293 = scmp.eq.s32.totalorder %s22, 0
      %p294 = por %p292, %p293
      %p295 = scmp.ne.s32.totalorder %s287, %s289
      %p296 = scmp.eq.s32.totalorder %s27, 1
      %p297 = por %p295, %p296
      %p298 = scmp.ne.s32.totalorder %s289, %s290
      %p299 = scmp.eq.s32.totalorder %s27, 0
      %p300 = por %p298, %p299
      %p301 = scmp.ne.s32.totalorder %s289, %s290
      %p302 = scmp.eq.s32.totalorder %s28, 1
      %p303 = por %p301, %p302
      %p305 = scmp.ne.s32.totalorder %s290, %s304
      %p306 = scmp.eq.s32.totalorder %s28, 0
      %p307 = por %p305, %p306
      %s309 = sadd.s32 %s308, 1
      %p312 = scmp.eq.s32.totalorder %s22, 1
      %p313 = scmp.ne.s32.totalorder %s308, %s310
      %p314 = scmp.eq.s32.totalorder %s22, 0
      %p315 = por %p313, %p314
      %p316 = scmp.ne.s32.totalorder %s308, %s310
      %p317 = scmp.eq.s32.totalorder %s27, 1
      %p318 = por %p316, %p317
      %p319 = scmp.ne.s32.totalorder %s310, %s311
      %p320 = scmp.eq.s32.totalorder %s27, 0
      %p321 = por %p319, %p320
      %p322 = scmp.ne.s32.totalorder %s310, %s311
      %p323 = scmp.eq.s32.totalorder %s28, 1
      %p324 = por %p322, %p323
      %p326 = scmp.ne.s32.totalorder %s311, %s325
      %p327 = scmp.eq.s32.totalorder %s28, 0
      %p328 = por %p326, %p327
      %s330 = sadd.s32 %s329, 1
      %p333 = scmp.eq.s32.totalorder %s22, 1
      %p334 = scmp.ne.s32.totalorder %s329, %s331
      %p335 = scmp.eq.s32.totalorder %s22, 0
      %p336 = por %p334, %p335
      %p337 = scmp.ne.s32.totalorder %s329, %s331
      %p338 = scmp.eq.s32.totalorder %s27, 1
      %p339 = por %p337, %p338
      %p340 = scmp.ne.s32.totalorder %s331, %s332
      %p341 = scmp.eq.s32.totalorder %s27, 0
      %p342 = por %p340, %p341
      %p343 = scmp.ne.s32.totalorder %s331, %s332
      %p344 = scmp.eq.s32.totalorder %s28, 1
      %p345 = por %p343, %p344
      %p347 = scmp.ne.s32.totalorder %s332, %s346
      %p348 = scmp.eq.s32.totalorder %s28, 0
      %p349 = por %p347, %p348
      %s350 = ssub.s32 %s22, %s29
      %p351 = scmp.eq.s32.totalorder %s350, 0
      %s353 = sadd.s32 %s352, 1
      %s354 = scalar_select %p351, %s352, %s353
      %p357 = pneg %p351
      %p358 = scmp.eq.s32.totalorder %s22, 1
      %p359 = por %p357, %p358
      %p360 = scmp.ne.s32.totalorder %s352, %s355
      %p361 = scmp.eq.s32.totalorder %s22, 0
      %p362 = por %p360, %p361
      %p363 = scmp.ne.s32.totalorder %s352, %s355
      %p364 = scmp.eq.s32.totalorder %s27, 1
      %p365 = por %p363, %p364
      %p366 = scmp.ne.s32.totalorder %s355, %s356
      %p367 = scmp.eq.s32.totalorder %s27, 0
      %p368 = por %p366, %p367
      %p369 = scmp.ne.s32.totalorder %s355, %s356
      %p370 = scmp.eq.s32.totalorder %s28, 1
      %p371 = por %p369, %p370
      %p373 = scmp.ne.s32.totalorder %s356, %s372
      %p374 = scmp.eq.s32.totalorder %s28, 0
      %p375 = por %p373, %p374
      %p376 = scmp.le.s32.totalorder 1, %s22
      %p377 = scmp.lt.s32.totalorder %s22, 3
      %p378 = pnand %p376, %p377
      %p379 = pneg %p378
      // Predicated region
      $region9: #{tpu_custom_call.1} parent=5 // pred_check
        _
      $region10: #{tpu_custom_call.1} parent=5 // pred_check_branch
        %381 = sbr.rel (%p378) target = $region12
      $region11: #{tpu_custom_call.1} parent=5 // pred_region
        %s382 = ssub.s32 %s22, 1
        // Predicated region
        $region13: #{tpu_custom_call.1} parent=11 // pred_check
          %p383 = pneg %p69
        $region14: #{tpu_custom_call.1} parent=11 // pred_check_branch
          %385 = sbr.rel (%p383) target = $region16
        $region15: #{tpu_custom_call.1} parent=11 // pred_region
          _
        $region16: #{tpu_custom_call.1} parent=11 // pred_fallthru
          _
        // Predicated region
        $region17: #{tpu_custom_call.1} parent=11 // pred_check
          %p386 = pneg %p90
        $region18: #{tpu_custom_call.1} parent=11 // pred_check_branch
          %388 = sbr.rel (%p386) target = $region20
        $region19: #{tpu_custom_call.1} parent=11 // pred_region
          _
        $region20: #{tpu_custom_call.1} parent=11 // pred_fallthru
          _
        // Predicated region
        $region21: #{tpu_custom_call.1} parent=11 // pred_check
          %p389 = pneg %p111
        $region22: #{tpu_custom_call.1} parent=11 // pred_check_branch
          %391 = sbr.rel (%p389) target = $region24
        $region23: #{tpu_custom_call.1} parent=11 // pred_region
          _
        $region24: #{tpu_custom_call.1} parent=11 // pred_fallthru
          _
        // Predicated region
        $region25: #{tpu_custom_call.1} parent=11 // pred_check
          %p392 = pneg %p132
        $region26: #{tpu_custom_call.1} parent=11 // pred_check_branch
          %394 = sbr.rel (%p392) target = $region28
        $region27: #{tpu_custom_call.1} parent=11 // pred_region
          _
        $region28: #{tpu_custom_call.1} parent=11 // pred_fallthru
          _
        // Predicated region
        $region29: #{tpu_custom_call.1} parent=11 // pred_check
          %p395 = pneg %p153
        $region30: #{tpu_custom_call.1} parent=11 // pred_check_branch
          %397 = sbr.rel (%p395) target = $region32
        $region31: #{tpu_custom_call.1} parent=11 // pred_region
          _
        $region32: #{tpu_custom_call.1} parent=11 // pred_fallthru
          _
        // Predicated region
        $region33: #{tpu_custom_call.1} parent=11 // pred_check
          %p398 = pneg %p174
        $region34: #{tpu_custom_call.1} parent=11 // pred_check_branch
          %400 = sbr.rel (%p398) target = $region36
        $region35: #{tpu_custom_call.1} parent=11 // pred_region
          _
        $region36: #{tpu_custom_call.1} parent=11 // pred_fallthru
          _
        // Predicated region
        $region37: #{tpu_custom_call.1} parent=11 // pred_check
          %p401 = pneg %p195
        $region38: #{tpu_custom_call.1} parent=11 // pred_check_branch
          %403 = sbr.rel (%p401) target = $region40
        $region39: #{tpu_custom_call.1} parent=11 // pred_region
          _
        $region40: #{tpu_custom_call.1} parent=11 // pred_fallthru
          _
        // Predicated region
        $region41: #{tpu_custom_call.1} parent=11 // pred_check
          %p404 = pneg %p216
        $region42: #{tpu_custom_call.1} parent=11 // pred_check_branch
          %406 = sbr.rel (%p404) target = $region44
        $region43: #{tpu_custom_call.1} parent=11 // pred_region
          _
        $region44: #{tpu_custom_call.1} parent=11 // pred_fallthru
          _
        // Predicated region
        $region45: #{tpu_custom_call.1} parent=11 // pred_check
          %p407 = pneg %p237
        $region46: #{tpu_custom_call.1} parent=11 // pred_check_branch
          %409 = sbr.rel (%p407) target = $region48
        $region47: #{tpu_custom_call.1} parent=11 // pred_region
          _
        $region48: #{tpu_custom_call.1} parent=11 // pred_fallthru
          _
        // Predicated region
        $region49: #{tpu_custom_call.1} parent=11 // pred_check
          %p410 = pneg %p258
        $region50: #{tpu_custom_call.1} parent=11 // pred_check_branch
          %412 = sbr.rel (%p410) target = $region52
        $region51: #{tpu_custom_call.1} parent=11 // pred_region
          _
        $region52: #{tpu_custom_call.1} parent=11 // pred_fallthru
          _
        // Predicated region
        $region53: #{tpu_custom_call.1} parent=11 // pred_check
          %p413 = pneg %p279
        $region54: #{tpu_custom_call.1} parent=11 // pred_check_branch
          %415 = sbr.rel (%p413) target = $region56
        $region55: #{tpu_custom_call.1} parent=11 // pred_region
          _
        $region56: #{tpu_custom_call.1} parent=11 // pred_fallthru
          _
        // Predicated region
        $region57: #{tpu_custom_call.1} parent=11 // pred_check
          %p416 = pneg %p300
        $region58: #{tpu_custom_call.1} parent=11 // pred_check_branch
          %418 = sbr.rel (%p416) target = $region60
        $region59: #{tpu_custom_call.1} parent=11 // pred_region
          _
        $region60: #{tpu_custom_call.1} parent=11 // pred_fallthru
          _
        // Predicated region
        $region61: #{tpu_custom_call.1} parent=11 // pred_check
          %p419 = pneg %p321
        $region62: #{tpu_custom_call.1} parent=11 // pred_check_branch
          %421 = sbr.rel (%p419) target = $region64
        $region63: #{tpu_custom_call.1} parent=11 // pred_region
          _
        $region64: #{tpu_custom_call.1} parent=11 // pred_fallthru
          _
        // Predicated region
        $region65: #{tpu_custom_call.1} parent=11 // pred_check
          %p422 = pneg %p342
        $region66: #{tpu_custom_call.1} parent=11 // pred_check_branch
          %424 = sbr.rel (%p422) target = $region68
        $region67: #{tpu_custom_call.1} parent=11 // pred_region
          %426 = vsyncadd [#allocation3], 0
          %s427 = sshll.u32 %s14, 4
          %s428 = int_to_ptr.hbm [resolvable:$true] %s427
          %s429 = sshll.u32 [#allocation2], 4
          %s430 = int_to_ptr.vmem [resolvable:$true] %s429
          %435 = dma.hbm_to_vmem [thread:$0]  %s428, 8192, %s430, [#allocation3], 256, 256, 16
        $region68: #{tpu_custom_call.1} parent=11 // pred_fallthru
          _
      $region12: #{tpu_custom_call.1} parent=5 // pred_fallthru
        _
      %p436 = scmp.lt.s32.totalorder %s22, 2
      // Predicated region
      $region69: #{tpu_custom_call.1} parent=5 // pred_check
        %p437 = pneg %p436
      $region70: #{tpu_custom_call.1} parent=5 // pred_check_branch
        %439 = sbr.rel (%p437) target = $region72
      $region71: #{tpu_custom_call.1} parent=5 // pred_region
        // Predicated region
        $region73: #{tpu_custom_call.1} parent=71 // pred_check
          %p440 = pneg %p42
        $region74: #{tpu_custom_call.1} parent=71 // pred_check_branch
          %442 = sbr.rel (%p440) target = $region76
        $region75: #{tpu_custom_call.1} parent=71 // pred_region
          %p443 = scmp.lt.s32.totalorder %s22, 1
          %s444 = scalar_select %p443, %s22, 1
          %s445 = smul.addr %s444, 2
          %s446 = smul.addr %s445, 8
          %s447 = scalar_lea.vmem %s0, %s446
        $region76: #{tpu_custom_call.1} parent=71 // pred_fallthru
          _
      $region72: #{tpu_custom_call.1} parent=5 // pred_fallthru
        _
      %p448 = scmp.le.s32.totalorder 1, %s22
      %p449 = scmp.lt.s32.totalorder %s22, 3
      %p450 = pnand %p448, %p449
      %p451 = pneg %p450
      // Predicated region
      $region77: #{tpu_custom_call.1} parent=5 // pred_check
        _
      $region78: #{tpu_custom_call.1} parent=5 // pred_check_branch
        %453 = sbr.rel (%p450) target = $region80
      $region79: #{tpu_custom_call.1} parent=5 // pred_region
        %s454 = ssub.s32 %s22, 1
        // Predicated region
        $region81: #{tpu_custom_call.1} parent=79 // pred_check
          %p455 = pneg %p342
        $region82: #{tpu_custom_call.1} parent=79 // pred_check_branch
          %457 = sbr.rel (%p455) target = $region84
        $region83: #{tpu_custom_call.1} parent=79 // pred_region
          %459 = dma.done [#allocation3], 8192
        $region84: #{tpu_custom_call.1} parent=79 // pred_fallthru
          _
        %p460 = scmp.lt.s32.totalorder %s27, 1
        %s461 = scalar_select %p460, %s27, 1
        %s462 = smul.addr %s461, 2
        %s463 = smul.addr %s462, 8
        %s464 = scalar_lea.vmem %s0, %s463
        %p465 = pneg %p48
        %p466 = pneg %p45
        %p467 = pneg %p69
        %p468 = pneg %p66
        %p469 = pneg %p90
        %p470 = pneg %p87
        %p471 = pneg %p111
        %p472 = pneg %p108
        %p473 = pneg %p132
        %p474 = pneg %p129
        %p475 = pneg %p153
        %p476 = pneg %p150
        %p477 = pneg %p174
        %p478 = pneg %p171
        %p479 = pneg %p195
        %p480 = pneg %p192
        %p481 = pneg %p216
        %p482 = pneg %p213
        %p483 = pneg %p237
        %p484 = pneg %p234
        %p485 = pneg %p258
        %p486 = pneg %p255
        %p487 = pneg %p279
        %p488 = pneg %p276
        %p489 = pneg %p300
        %p490 = pneg %p297
        %p491 = pneg %p321
        %p492 = pneg %p318
        %p493 = pneg %p342
        %p494 = pneg %p339
        %p495 = pneg %p368
        %p496 = pneg %p365
        %p497 = scmp.lt.s32.totalorder %s27, 1
        %s498 = scalar_select %p497, %s27, 1
        %s499 = smul.addr %s498, 2
        %s500 = smul.addr %s499, 4
        %s501 = scalar_lea.vmem %s15, %s500
        %p502 = scmp.lt.s32.totalorder %s27, 1
        %s503 = scalar_select %p502, %s27, 1
        %s504 = smul.addr %s503, 2
        %s505 = smul.addr %s504, 8
        %s506 = scalar_lea.vmem %s0, %s505
        %p507 = scmp.lt.s32.totalorder %s27, 1
        %s508 = scalar_select %p507, %s27, 1
        %s509 = smul.addr %s508, 2
        %s510 = smul.addr %s509, 4
        %s511 = scalar_lea.vmem %s15, %s510
        %v512 = vld [vmem:[%s506] sm:$0xff]
        %v513 = vld [vmem:[%s506 + $0x8] sm:$0xff]
        %516 = vrot.lane.b32.xlu0 %v512, 17
        %v517 = vpop.permute.xlu0 %516
        %518 = vrot.lane.b32.xlu0 %v513, 17
        %v519 = vpop.permute.xlu0 %518
        %vm520 = vcmask 138240
        %v521 = vsel %vm520, %v517, %v519
        %v524 = vsel %vm520, 0.0, %v517
        %v525 = vld [vmem:[%s3] ss:$8 sm:$0x3]
        %v527 = vperm.slane %v525, 0
        %v528 = vperm.slane %v525, 1
        %v531 = vmul.f32 %v524, %v527
        %v532 = vmul.f32 %v521, %v528
        %533 = vrot.lane.b32.xlu0 %v512, 16
        %v534 = vpop.permute.xlu0 %533
        %535 = vrot.lane.b32.xlu0 %v513, 16
        %v536 = vpop.permute.xlu0 %535
        %vm537 = vcmask 130048
        %v538 = vsel %vm537, %v534, %v536
        %v541 = vsel %vm537, 0.0, %v534
        %s542 = scalar_lea.vmem %s3, 1
        %v543 = vld [vmem:[%s542] ss:$8 sm:$0x3]
        %v545 = vperm.slane %v543, 0
        %v546 = vperm.slane %v543, 1
        %v549 = vmul.f32 %v541, %v545
        %v550 = vmul.f32 %v538, %v546
        %551 = vrot.lane.b32.xlu0 %v512, 15
        %v552 = vpop.permute.xlu0 %551
        %553 = vrot.lane.b32.xlu0 %v513, 15
        %v554 = vpop.permute.xlu0 %553
        %vm555 = vcmask 121856
        %v556 = vsel %vm555, %v552, %v554
        %v559 = vsel %vm555, 0.0, %v552
        %s560 = scalar_lea.vmem %s3, 2
        %v561 = vld [vmem:[%s560] ss:$8 sm:$0x3]
        %v563 = vperm.slane %v561, 0
        %v564 = vperm.slane %v561, 1
        %v567 = vmul.f32 %v559, %v563
        %v568 = vmul.f32 %v556, %v564
        %569 = vrot.lane.b32.xlu0 %v512, 1
        %v570 = vpop.permute.xlu0 %569
        %571 = vrot.lane.b32.xlu0 %v513, 1
        %v572 = vpop.permute.xlu0 %571
        %vm573 = vcmask 7168
        %v574 = vsel %vm573, %v570, %v572
        %v577 = vsel %vm573, 0.0, %v570
        %s578 = scalar_lea.vmem %s3, 3
        %v579 = vld [vmem:[%s578] ss:$8 sm:$0x3]
        %v581 = vperm.slane %v579, 0
        %v582 = vperm.slane %v579, 1
        %v585 = vmul.f32 %v577, %v581
        %v586 = vmul.f32 %v574, %v582
        %s587 = scalar_lea.vmem %s3, 4
        %v588 = vld [vmem:[%s587] ss:$8 sm:$0x3]
        %v590 = vperm.slane %v588, 0
        %v591 = vperm.slane %v588, 1
        %v594 = vmul.f32 %v512, %v590
        %v595 = vmul.f32 %v513, %v591
        %596 = vrot.lane.b32.xlu0 %v512, 127
        %v597 = vpop.permute.xlu0 %596
        %598 = vrot.lane.b32.xlu0 %v513, 127
        %v599 = vpop.permute.xlu0 %598
        %vm600 = vcmask 1039360
        %v601 = vsel %vm600, %v597, %v599
        %v604 = vsel %vm600, %v599, 0.0
        %s605 = scalar_lea.vmem %s3, 5
        %v606 = vld [vmem:[%s605] ss:$8 sm:$0x3]
        %v608 = vperm.slane %v606, 0
        %v609 = vperm.slane %v606, 1
        %v612 = vmul.f32 %v601, %v608
        %v613 = vmul.f32 %v604, %v609
        %614 = vrot.lane.b32.xlu0 %v512, 113
        %v615 = vpop.permute.xlu0 %614
        %616 = vrot.lane.b32.xlu0 %v513, 113
        %v617 = vpop.permute.xlu0 %616
        %vm618 = vcmask 924672
        %v619 = vsel %vm618, %v615, %v617
        %v622 = vsel %vm618, %v617, 0.0
        %s623 = scalar_lea.vmem %s3, 6
        %v624 = vld [vmem:[%s623] ss:$8 sm:$0x3]
        %v626 = vperm.slane %v624, 0
        %v627 = vperm.slane %v624, 1
        %v630 = vmul.f32 %v619, %v626
        %v631 = vmul.f32 %v622, %v627
        %632 = vrot.lane.b32.xlu0 %v512, 112
        %v633 = vpop.permute.xlu0 %632
        %634 = vrot.lane.b32.xlu0 %v513, 112
        %v635 = vpop.permute.xlu0 %634
        %vm636 = vcmask 916480
        %v637 = vsel %vm636, %v633, %v635
        %v640 = vsel %vm636, %v635, 0.0
        %s641 = scalar_lea.vmem %s3, 7
        %v642 = vld [vmem:[%s641] ss:$8 sm:$0x3]
        %v644 = vperm.slane %v642, 0
        %v645 = vperm.slane %v642, 1
        %v648 = vmul.f32 %v637, %v644
        %v649 = vmul.f32 %v640, %v645
        %650 = vrot.lane.b32.xlu0 %v512, 111
        %v651 = vpop.permute.xlu0 %650
        %652 = vrot.lane.b32.xlu0 %v513, 111
        %v653 = vpop.permute.xlu0 %652
        %vm654 = vcmask 908288
        %v655 = vsel %vm654, %v651, %v653
        %v658 = vsel %vm654, %v653, 0.0
        %s659 = scalar_lea.vmem %s3, 16
        %v660 = vld [vmem:[%s659] ss:$8 sm:$0x3]
        %v662 = vperm.slane %v660, 0
        %v663 = vperm.slane %v660, 1
        %v666 = vmul.f32 %v655, %v662
        %v667 = vmul.f32 %v658, %v663
        %v668 = vld [vmem:[%s1] sm:$0xff]
        %v669 = vld [vmem:[%s1 + $0x8] sm:$0xff]
        %v670 = vld [vmem:[%s2] sm:$0xff]
        %v671 = vld [vmem:[%s2 + $0x8] sm:$0xff]
        %673 = vset.pattern.permute.xlu0 0
        %674 = vperm.xlu0 %673, %v670
        %v675 = vpop.permute.xlu0 %674
        %678 = vset.pattern.permute.xlu0 0
        %679 = vperm.xlu0 %678, %v671
        %v680 = vpop.permute.xlu0 %679
        %vm682 = vcmask 588800
        %v684 = vsel %vm682, %v668, 0
        %v687 = vsel %vm682, %v669, 0
        %689 = vmatpush.msra.mxu0 0.0
        %690 = vmatpush.msra.mxu0 0.0
        %691 = vmatpush.msra.mxu0 0.0
        %692 = vmatpush.msra.mxu0 0.0
        %693 = vmatpush.msra.mxu0 0.0
        %694 = vmatpush.msra.mxu0 0.0
        %695 = vmatpush.msra.mxu0 0.0
        %696 = vmatpush.msra.mxu0 %v666
        %697 = vmatpush.msra.mxu0 %v648
        %698 = vmatpush.msra.mxu0 %v630
        %699 = vmatpush.msra.mxu0 %v612
        %700 = vmatpush.msra.mxu0 %v594
        %701 = vmatpush.msra.mxu0 %v585
        %702 = vmatpush.msra.mxu0 %v567
        %703 = vmatpush.msra.mxu0 %v549
        %704 = vmatpush.msra.mxu0 %v531
        %705 = vmatmul.f32.gmra.mxu0 %v684
        %v706 = vpop.f32.mrf.mxu0
        %v707 = vadd.f32 %v675, %v706
        %708 = vmatmul.f32.gmra.mxu0 %v687
        %v709 = vpop.f32.mrf.mxu0
        %v710 = vadd.f32 %v680, %v709
        %711 = vdwg.mxu0
        %712 = vmatpush.msra.mxu0 0.0
        %713 = vmatpush.msra.mxu0 0.0
        %714 = vmatpush.msra.mxu0 0.0
        %715 = vmatpush.msra.mxu0 0.0
        %716 = vmatpush.msra.mxu0 0.0
        %717 = vmatpush.msra.mxu0 0.0
        %718 = vmatpush.msra.mxu0 0.0
        %719 = vmatpush.msra.mxu0 %v667
        %720 = vmatpush.msra.mxu0 %v649
        %721 = vmatpush.msra.mxu0 %v631
        %722 = vmatpush.msra.mxu0 %v613
        %723 = vmatpush.msra.mxu0 %v595
        %724 = vmatpush.msra.mxu0 %v586
        %725 = vmatpush.msra.mxu0 %v568
        %726 = vmatpush.msra.mxu0 %v550
        %727 = vmatpush.msra.mxu0 %v532
        %728 = vmatmul.f32.gmra.mxu0 %v684
        %v729 = vpop.f32.mrf.mxu0
        %v730 = vadd.f32 %v675, %v729
        %731 = vmatmul.f32.gmra.mxu0 %v687
        %v732 = vpop.f32.mrf.mxu0
        %v733 = vadd.f32 %v680, %v732
        %734 = vdwg.mxu0
        %v735 = vmax.f32 %v707, 0.0
        %v736 = vmax.f32 %v730, 0.0
        %v737 = vmax.f32 %v710, 0.0
        %v738 = vmax.f32 %v733, 0.0
        %743 = vrot.lane.b32.xlu0 %v735, 127
        %v744 = vpop.permute.xlu0 %743
        %745 = vrot.lane.b32.xlu0 %v736, 127
        %v746 = vpop.permute.xlu0 %745
        %747 = vrot.lane.b32.xlu0 %v737, 127
        %v748 = vpop.permute.xlu0 %747
        %749 = vrot.lane.b32.xlu0 %v738, 127
        %v750 = vpop.permute.xlu0 %749
        %v751 = vsel %vm600, %v744, %v746
        %v752 = vsel %vm600, %v748, %v750
        %v757 = vsel %vm600, %v746, 0.0
        %v758 = vsel %vm600, %v750, 0.0
        %v759 = vmax.f32 %v735, %v751
        %v760 = vmax.f32 %v736, %v757
        %v761 = vmax.f32 %v737, %v752
        %v762 = vmax.f32 %v738, %v758
        %763 = vrot.lane.b32.xlu0 %v735, 112
        %v764 = vpop.permute.xlu0 %763
        %765 = vrot.lane.b32.xlu0 %v736, 112
        %v766 = vpop.permute.xlu0 %765
        %767 = vrot.lane.b32.xlu0 %v737, 112
        %v768 = vpop.permute.xlu0 %767
        %769 = vrot.lane.b32.xlu0 %v738, 112
        %v770 = vpop.permute.xlu0 %769
        %v771 = vsel %vm636, %v764, %v766
        %v772 = vsel %vm636, %v768, %v770
        %v777 = vsel %vm636, %v766, 0.0
        %v778 = vsel %vm636, %v770, 0.0
        %779 = vrot.lane.b32.xlu0 %v735, 111
        %v780 = vpop.permute.xlu0 %779
        %781 = vrot.lane.b32.xlu0 %v736, 111
        %v782 = vpop.permute.xlu0 %781
        %783 = vrot.lane.b32.xlu0 %v737, 111
        %v784 = vpop.permute.xlu0 %783
        %785 = vrot.lane.b32.xlu0 %v738, 111
        %v786 = vpop.permute.xlu0 %785
        %v787 = vsel %vm654, %v780, %v782
        %v788 = vsel %vm654, %v784, %v786
        %v793 = vsel %vm654, %v782, 0.0
        %v794 = vsel %vm654, %v786, 0.0
        %v795 = vmax.f32 %v771, %v787
        %v796 = vmax.f32 %v777, %v793
        %v797 = vmax.f32 %v772, %v788
        %v798 = vmax.f32 %v778, %v794
        %v799 = vmax.f32 %v759, %v795
        %v800 = vmax.f32 %v760, %v796
        %v801 = vmax.f32 %v761, %v797
        %v802 = vmax.f32 %v762, %v798
        %v803 = vld [vmem:[%s4] sm:$0xff]
        %v804 = vld [vmem:[%s4 + $0x8] sm:$0xff]
        %v805 = vld [vmem:[%s4 + $0x10] sm:$0xff]
        %v806 = vld [vmem:[%s4 + $0x18] sm:$0xff]
        %v807 = vld [vmem:[%s4 + $0x20] sm:$0xff]
        %v808 = vld [vmem:[%s4 + $0x28] sm:$0xff]
        %v809 = vld [vmem:[%s4 + $0x30] sm:$0xff]
        %v810 = vld [vmem:[%s4 + $0x38] sm:$0xff]
        %v811 = vld [vmem:[%s4 + $0x40] sm:$0xff]
        %v812 = vld [vmem:[%s4 + $0x48] sm:$0xff]
        %v813 = vld [vmem:[%s4 + $0x50] sm:$0xff]
        %v814 = vld [vmem:[%s4 + $0x58] sm:$0xff]
        %v815 = vld [vmem:[%s4 + $0x60] sm:$0xff]
        %v816 = vld [vmem:[%s4 + $0x68] sm:$0xff]
        %v817 = vld [vmem:[%s4 + $0x70] sm:$0xff]
        %v818 = vld [vmem:[%s4 + $0x78] sm:$0xff]
        %v819 = vld [vmem:[%s4 + $0x80] sm:$0xff]
        %v820 = vld [vmem:[%s4 + $0x88] sm:$0xff]
        %v821 = vld [vmem:[%s4 + $0x90] sm:$0xff]
        %v822 = vld [vmem:[%s4 + $0x98] sm:$0xff]
        %v823 = vld [vmem:[%s4 + $0xa0] sm:$0xff]
        %v824 = vld [vmem:[%s4 + $0xa8] sm:$0xff]
        %v825 = vld [vmem:[%s4 + $0xb0] sm:$0xff]
        %v826 = vld [vmem:[%s4 + $0xb8] sm:$0xff]
        %v827 = vld [vmem:[%s4 + $0xc0] sm:$0xff]
        %v828 = vld [vmem:[%s4 + $0xc8] sm:$0xff]
        %v829 = vld [vmem:[%s4 + $0xd0] sm:$0xff]
        %v830 = vld [vmem:[%s4 + $0xd8] sm:$0xff]
        %v831 = vld [vmem:[%s4 + $0xe0] sm:$0xff]
        %v832 = vld [vmem:[%s4 + $0xe8] sm:$0xff]
        %v833 = vld [vmem:[%s4 + $0xf0] sm:$0xff]
        %v834 = vld [vmem:[%s4 + $0xf8] sm:$0xff]
        %835 = vmatpush.msra.mxu0 %v818
        %836 = vmatpush.msra.mxu0 %v817
        %837 = vmatpush.msra.mxu0 %v816
        %838 = vmatpush.msra.mxu0 %v815
        %839 = vmatpush.msra.mxu0 %v814
        %840 = vmatpush.msra.mxu0 %v813
        %841 = vmatpush.msra.mxu0 %v812
        %842 = vmatpush.msra.mxu0 %v811
        %843 = vmatpush.msra.mxu0 %v810
        %844 = vmatpush.msra.mxu0 %v809
        %845 = vmatpush.msra.mxu0 %v808
        %846 = vmatpush.msra.mxu0 %v807
        %847 = vmatpush.msra.mxu0 %v806
        %848 = vmatpush.msra.mxu0 %v805
        %849 = vmatpush.msra.mxu0 %v804
        %850 = vmatpush.msra.mxu0 %v803
        %851 = vmatmul.f32.gmra.mxu0 %v799
        %v852 = vpop.f32.mrf.mxu0
        %v853 = vadd.f32 0.0, %v852
        %854 = vmatmul.f32.gmra.mxu0 %v801
        %v855 = vpop.f32.mrf.mxu0
        %v856 = vadd.f32 0.0, %v855
        %857 = vdwg.mxu0
        %858 = vmatpush.msra.mxu0 %v834
        %859 = vmatpush.msra.mxu0 %v833
        %860 = vmatpush.msra.mxu0 %v832
        %861 = vmatpush.msra.mxu0 %v831
        %862 = vmatpush.msra.mxu0 %v830
        %863 = vmatpush.msra.mxu0 %v829
        %864 = vmatpush.msra.mxu0 %v828
        %865 = vmatpush.msra.mxu0 %v827
        %866 = vmatpush.msra.mxu0 %v826
        %867 = vmatpush.msra.mxu0 %v825
        %868 = vmatpush.msra.mxu0 %v824
        %869 = vmatpush.msra.mxu0 %v823
        %870 = vmatpush.msra.mxu0 %v822
        %871 = vmatpush.msra.mxu0 %v821
        %872 = vmatpush.msra.mxu0 %v820
        %873 = vmatpush.msra.mxu0 %v819
        %874 = vmatmul.f32.gmra.mxu0 %v800
        %v875 = vpop.f32.mrf.mxu0
        %v876 = vadd.f32 %v853, %v875
        %877 = vmatmul.f32.gmra.mxu0 %v802
        %v878 = vpop.f32.mrf.mxu0
        %v879 = vadd.f32 %v856, %v878
        %880 = vdwg.mxu0
        %883 = vrot.lane.b32.xlu0 %v876, 9
        %v884 = vpop.permute.xlu0 %883
        %885 = vrot.lane.b32.xlu0 %v879, 9
        %v886 = vpop.permute.xlu0 %885
        %vm889 = vcmask 72704
        %v890 = vsel %vm889, 0.0, %v884
        %v891 = vsel %vm889, 0.0, %v886
        %v892 = vld [vmem:[%s7] sm:$0x1]
        %v893 = vperm.slane %v892, 0
        %v894 = vmul.f32 %v890, %v893
        %v895 = vmul.f32 %v891, %v893
        %896 = vrot.lane.b32.xlu0 %v876, 8
        %v897 = vpop.permute.xlu0 %896
        %898 = vrot.lane.b32.xlu0 %v879, 8
        %v899 = vpop.permute.xlu0 %898
        %vm902 = vcmask 64512
        %v903 = vsel %vm902, 0.0, %v897
        %v904 = vsel %vm902, 0.0, %v899
        %v905 = vld [vmem:[%s7 + $0x1] sm:$0x1]
        %v906 = vperm.slane %v905, 0
        %v907 = vmul.f32 %v903, %v906
        %v908 = vmul.f32 %v904, %v906
        %909 = vrot.lane.b32.xlu0 %v876, 7
        %v910 = vpop.permute.xlu0 %909
        %911 = vrot.lane.b32.xlu0 %v879, 7
        %v912 = vpop.permute.xlu0 %911
        %vm915 = vcmask 56320
        %v916 = vsel %vm915, 0.0, %v910
        %v917 = vsel %vm915, 0.0, %v912
        %v918 = vld [vmem:[%s7 + $0x2] sm:$0x1]
        %v919 = vperm.slane %v918, 0
        %v920 = vmul.f32 %v916, %v919
        %v921 = vmul.f32 %v917, %v919
        %922 = vrot.lane.b32.xlu0 %v876, 1
        %v923 = vpop.permute.xlu0 %922
        %924 = vrot.lane.b32.xlu0 %v879, 1
        %v925 = vpop.permute.xlu0 %924
        %v928 = vsel %vm573, 0.0, %v923
        %v929 = vsel %vm573, 0.0, %v925
        %v930 = vld [vmem:[%s7 + $0x3] sm:$0x1]
        %v931 = vperm.slane %v930, 0
        %v932 = vmul.f32 %v928, %v931
        %v933 = vmul.f32 %v929, %v931
        %v934 = vld [vmem:[%s7 + $0x4] sm:$0x1]
        %v935 = vperm.slane %v934, 0
        %v936 = vmul.f32 %v876, %v935
        %v937 = vmul.f32 %v879, %v935
        %938 = vrot.lane.b32.xlu0 %v876, 127
        %v939 = vpop.permute.xlu0 %938
        %940 = vrot.lane.b32.xlu0 %v879, 127
        %v941 = vpop.permute.xlu0 %940
        %vm944 = vcmask 515072
        %v945 = vsel %vm944, %v939, 0.0
        %v946 = vsel %vm944, %v941, 0.0
        %v947 = vld [vmem:[%s7 + $0x5] sm:$0x1]
        %v948 = vperm.slane %v947, 0
        %v949 = vmul.f32 %v945, %v948
        %v950 = vmul.f32 %v946, %v948
        %951 = vrot.lane.b32.xlu0 %v876, 121
        %v952 = vpop.permute.xlu0 %951
        %953 = vrot.lane.b32.xlu0 %v879, 121
        %v954 = vpop.permute.xlu0 %953
        %vm957 = vcmask 465920
        %v958 = vsel %vm957, %v952, 0.0
        %v959 = vsel %vm957, %v954, 0.0
        %v960 = vld [vmem:[%s7 + $0x6] sm:$0x1]
        %v961 = vperm.slane %v960, 0
        %v962 = vmul.f32 %v958, %v961
        %v963 = vmul.f32 %v959, %v961
        %964 = vrot.lane.b32.xlu0 %v876, 120
        %v965 = vpop.permute.xlu0 %964
        %966 = vrot.lane.b32.xlu0 %v879, 120
        %v967 = vpop.permute.xlu0 %966
        %vm970 = vcmask 457728
        %v971 = vsel %vm970, %v965, 0.0
        %v972 = vsel %vm970, %v967, 0.0
        %v973 = vld [vmem:[%s7 + $0x7] sm:$0x1]
        %v974 = vperm.slane %v973, 0
        %v975 = vmul.f32 %v971, %v974
        %v976 = vmul.f32 %v972, %v974
        %977 = vrot.lane.b32.xlu0 %v876, 119
        %v978 = vpop.permute.xlu0 %977
        %979 = vrot.lane.b32.xlu0 %v879, 119
        %v980 = vpop.permute.xlu0 %979
        %vm983 = vcmask 449536
        %v984 = vsel %vm983, %v978, 0.0
        %v985 = vsel %vm983, %v980, 0.0
        %v986 = vld [vmem:[%s7 + $0x8] sm:$0x1]
        %v987 = vperm.slane %v986, 0
        %v988 = vmul.f32 %v984, %v987
        %v989 = vmul.f32 %v985, %v987
        %v990 = vld [vmem:[%s5] sm:$0xff]
        %v991 = vld [vmem:[%s6] sm:$0xf]
        %993 = vset.pattern.permute.xlu0 0
        %994 = vperm.xlu0 %993, %v991
        %v995 = vpop.permute.xlu0 %994
        %998 = vst [vmem:[#allocation1] ss:$2 sm:$0xff] %v990
        %v999 = vld.sshfl [vmem:[#allocation1] sm:$0xff pattern:$0x75316420]
        %v1000 = vld.sshfl [vmem:[#allocation1 + $0x8] sm:$0xff pattern:$0x75316420]
        %v1002 = vsel %vm537, %v1000, 0
        %1004 = vmatpush.msra.mxu0 %v976
        %1005 = vmatpush.msra.mxu0 %v975
        %1006 = vmatpush.msra.mxu0 %v963
        %1007 = vmatpush.msra.mxu0 %v962
        %1008 = vmatpush.msra.mxu0 %v950
        %1009 = vmatpush.msra.mxu0 %v949
        %1010 = vmatpush.msra.mxu0 %v937
        %1011 = vmatpush.msra.mxu0 %v936
        %1012 = vmatpush.msra.mxu0 %v933
        %1013 = vmatpush.msra.mxu0 %v932
        %1014 = vmatpush.msra.mxu0 %v921
        %1015 = vmatpush.msra.mxu0 %v920
        %1016 = vmatpush.msra.mxu0 %v908
        %1017 = vmatpush.msra.mxu0 %v907
        %1018 = vmatpush.msra.mxu0 %v895
        %1019 = vmatpush.msra.mxu0 %v894
        %1020 = vmatmul.f32.gmra.mxu0 %v999
        %v1021 = vpop.f32.mrf.mxu0
        %v1022 = vadd.f32 %v995, %v1021
        %1023 = vdwg.mxu0
        %1024 = vmatpush.msra.mxu0 0.0
        %1025 = vmatpush.msra.mxu0 0.0
        %1026 = vmatpush.msra.mxu0 0.0
        %1027 = vmatpush.msra.mxu0 0.0
        %1028 = vmatpush.msra.mxu0 0.0
        %1029 = vmatpush.msra.mxu0 0.0
        %1030 = vmatpush.msra.mxu0 0.0
        %1031 = vmatpush.msra.mxu0 0.0
        %1032 = vmatpush.msra.mxu0 0.0
        %1033 = vmatpush.msra.mxu0 0.0
        %1034 = vmatpush.msra.mxu0 0.0
        %1035 = vmatpush.msra.mxu0 0.0
        %1036 = vmatpush.msra.mxu0 0.0
        %1037 = vmatpush.msra.mxu0 0.0
        %1038 = vmatpush.msra.mxu0 %v989
        %1039 = vmatpush.msra.mxu0 %v988
        %1040 = vmatmul.f32.gmra.mxu0 %v1002
        %v1041 = vpop.f32.mrf.mxu0
        %v1042 = vadd.f32 %v1022, %v1041
        %1043 = vdwg.mxu0
        %v1044 = vmax.f32 %v1042, 0.0
        %1046 = vrot.lane.b32.xlu0 %v1044, 127
        %v1047 = vpop.permute.xlu0 %1046
        %v1049 = vsel %vm944, %v1047, 0.0
        %v1050 = vmax.f32 %v1044, %v1049
        %1051 = vrot.lane.b32.xlu0 %v1044, 120
        %v1052 = vpop.permute.xlu0 %1051
        %v1054 = vsel %vm970, %v1052, 0.0
        %1055 = vrot.lane.b32.xlu0 %v1044, 119
        %v1056 = vpop.permute.xlu0 %1055
        %v1058 = vsel %vm983, %v1056, 0.0
        %v1059 = vmax.f32 %v1054, %v1058
        %v1060 = vmax.f32 %v1050, %v1059
        %v1061 = vld [vmem:[%s8] sm:$0xff]
        %v1062 = vld [vmem:[%s8 + $0x8] sm:$0xff]
        %v1063 = vld [vmem:[%s8 + $0x10] sm:$0xff]
        %v1064 = vld [vmem:[%s8 + $0x18] sm:$0xff]
        %v1065 = vld [vmem:[%s8 + $0x20] sm:$0xff]
        %v1066 = vld [vmem:[%s8 + $0x28] sm:$0xff]
        %v1067 = vld [vmem:[%s8 + $0x30] sm:$0xff]
        %v1068 = vld [vmem:[%s8 + $0x38] sm:$0xff]
        %vm1069 = vcmask 523264
        %v1071 = vsel %vm1069, %v1060, 0
        %1073 = vmatpush.msra.mxu0 0.0
        %1074 = vmatpush.msra.mxu0 0.0
        %1075 = vmatpush.msra.mxu0 0.0
        %1076 = vmatpush.msra.mxu0 0.0
        %1077 = vmatpush.msra.mxu0 0.0
        %1078 = vmatpush.msra.mxu0 0.0
        %1079 = vmatpush.msra.mxu0 0.0
        %1080 = vmatpush.msra.mxu0 0.0
        %1081 = vmatpush.msra.mxu0 %v1068
        %1082 = vmatpush.msra.mxu0 %v1067
        %1083 = vmatpush.msra.mxu0 %v1066
        %1084 = vmatpush.msra.mxu0 %v1065
        %1085 = vmatpush.msra.mxu0 %v1064
        %1086 = vmatpush.msra.mxu0 %v1063
        %1087 = vmatpush.msra.mxu0 %v1062
        %1088 = vmatpush.msra.mxu0 %v1061
        %1089 = vmatmul.f32.gmra.mxu0 %v1071
        %v1090 = vpop.f32.mrf.mxu0
        %v1091 = vadd.f32 0.0, %v1090
        %1092 = vdwg.mxu0
        %v1093 = vld [vmem:[%s9] sm:$0xff]
        %v1094 = vld [vmem:[%s9 + $0x8] sm:$0xff]
        %v1095 = vld [vmem:[%s10] sm:$0xff]
        %v1096 = vld [vmem:[%s10 + $0x8] sm:$0xff]
        %1098 = vset.pattern.permute.xlu0 0
        %1099 = vperm.xlu0 %1098, %v1095
        %v1100 = vpop.permute.xlu0 %1099
        %1103 = vset.pattern.permute.xlu0 0
        %1104 = vperm.xlu0 %1103, %v1096
        %v1105 = vpop.permute.xlu0 %1104
        %vm1107 = vcmask 31744
        %v1109 = vsel %vm1107, %v1093, 0
        %v1112 = vsel %vm1107, %v1094, 0
        %vm1114 = vcmask 1043456
        %v1116 = vsel %vm1114, %v1091, 0
        %1118 = vmatpush.msra.mxu0 0.0
        %1119 = vmatpush.msra.mxu0 0.0
        %1120 = vmatpush.msra.mxu0 0.0
        %1121 = vmatpush.msra.mxu0 0.0
        %1122 = vmatpush.msra.mxu0 0.0
        %1123 = vmatpush.msra.mxu0 0.0
        %1124 = vmatpush.msra.mxu0 0.0
        %1125 = vmatpush.msra.mxu0 0.0
        %1126 = vmatpush.msra.mxu0 0.0
        %1127 = vmatpush.msra.mxu0 0.0
        %1128 = vmatpush.msra.mxu0 0.0
        %1129 = vmatpush.msra.mxu0 0.0
        %1130 = vmatpush.msra.mxu0 0.0
        %1131 = vmatpush.msra.mxu0 0.0
        %1132 = vmatpush.msra.mxu0 0.0
        %1133 = vmatpush.msra.mxu0 %v1116
        %1134 = vmatmul.f32.gmra.mxu0 %v1109
        %v1135 = vpop.f32.mrf.mxu0
        %v1136 = vadd.f32 %v1100, %v1135
        %1137 = vmatmul.f32.gmra.mxu0 %v1112
        %v1138 = vpop.f32.mrf.mxu0
        %v1139 = vadd.f32 %v1105, %v1138
        %1140 = vdwg.mxu0
        %v1141 = vmax.f32 %v1136, 0.0
        %v1142 = vmax.f32 %v1139, 0.0
        %v1143 = vld [vmem:[%s11] sm:$0xff]
        %v1144 = vld [vmem:[%s11 + $0x8] sm:$0xff]
        %s1145 = scalar_lea.vmem %s9, 16
        %v1146 = vld [vmem:[%s1145] sm:$0xff]
        %v1147 = vld [vmem:[%s1145 + $0x8] sm:$0xff]
        %v1149 = vsel %vm1107, %v1146, 0
        %v1152 = vsel %vm1107, %v1147, 0
        %1154 = vmatpush.msra.mxu0 0.0
        %1155 = vmatpush.msra.mxu0 0.0
        %1156 = vmatpush.msra.mxu0 0.0
        %1157 = vmatpush.msra.mxu0 0.0
        %1158 = vmatpush.msra.mxu0 0.0
        %1159 = vmatpush.msra.mxu0 0.0
        %1160 = vmatpush.msra.mxu0 0.0
        %1161 = vmatpush.msra.mxu0 0.0
        %1162 = vmatpush.msra.mxu0 0.0
        %1163 = vmatpush.msra.mxu0 0.0
        %1164 = vmatpush.msra.mxu0 0.0
        %1165 = vmatpush.msra.mxu0 0.0
        %1166 = vmatpush.msra.mxu0 0.0
        %1167 = vmatpush.msra.mxu0 0.0
        %1168 = vmatpush.msra.mxu0 0.0
        %1169 = vmatpush.msra.mxu0 %v1116
        %1170 = vmatmul.f32.gmra.mxu0 %v1149
        %v1171 = vpop.f32.mrf.mxu0
        %v1172 = vadd.f32 %v1100, %v1171
        %1173 = vmatmul.f32.gmra.mxu0 %v1152
        %v1174 = vpop.f32.mrf.mxu0
        %v1175 = vadd.f32 %v1105, %v1174
        %1176 = vdwg.mxu0
        %v1177 = vmax.f32 %v1172, 0.0
        %v1178 = vmax.f32 %v1175, 0.0
        %s1179 = scalar_lea.vmem %s11, 16
        %v1180 = vld [vmem:[%s1179] sm:$0xff]
        %v1181 = vld [vmem:[%s1179 + $0x8] sm:$0xff]
        %v1183 = vsel %vm537, %v1177, 0
        %v1186 = vsel %vm537, %v1178, 0
        %1188 = vmatpush.msra.mxu0 0.0
        %1189 = vmatpush.msra.mxu0 0.0
        %1190 = vmatpush.msra.mxu0 0.0
        %1191 = vmatpush.msra.mxu0 0.0
        %1192 = vmatpush.msra.mxu0 0.0
        %1193 = vmatpush.msra.mxu0 0.0
        %1194 = vmatpush.msra.mxu0 0.0
        %1195 = vmatpush.msra.mxu0 0.0
        %1196 = vmatpush.msra.mxu0 0.0
        %1197 = vmatpush.msra.mxu0 0.0
        %1198 = vmatpush.msra.mxu0 0.0
        %1199 = vmatpush.msra.mxu0 0.0
        %1200 = vmatpush.msra.mxu0 0.0
        %1201 = vmatpush.msra.mxu0 0.0
        %1202 = vmatpush.msra.mxu0 %v1181
        %1203 = vmatpush.msra.mxu0 %v1180
        %1204 = vmatmul.f32.gmra.mxu0 %v1183
        %v1205 = vpop.f32.mrf.mxu0
        %v1206 = vadd.f32 0.0, %v1205
        %1207 = vmatmul.f32.gmra.mxu0 %v1186
        %v1208 = vpop.f32.mrf.mxu0
        %v1209 = vadd.f32 0.0, %v1208
        %1210 = vdwg.mxu0
        %v1212 = vsel %vm537, %v1141, 0
        %v1215 = vsel %vm537, %v1142, 0
        %1217 = vmatpush.msra.mxu0 0.0
        %1218 = vmatpush.msra.mxu0 0.0
        %1219 = vmatpush.msra.mxu0 0.0
        %1220 = vmatpush.msra.mxu0 0.0
        %1221 = vmatpush.msra.mxu0 0.0
        %1222 = vmatpush.msra.mxu0 0.0
        %1223 = vmatpush.msra.mxu0 0.0
        %1224 = vmatpush.msra.mxu0 0.0
        %1225 = vmatpush.msra.mxu0 0.0
        %1226 = vmatpush.msra.mxu0 0.0
        %1227 = vmatpush.msra.mxu0 0.0
        %1228 = vmatpush.msra.mxu0 0.0
        %1229 = vmatpush.msra.mxu0 0.0
        %1230 = vmatpush.msra.mxu0 0.0
        %1231 = vmatpush.msra.mxu0 %v1144
        %1232 = vmatpush.msra.mxu0 %v1143
        %1233 = vmatmul.f32.gmra.mxu0 %v1212
        %v1234 = vpop.f32.mrf.mxu0
        %v1235 = vadd.f32 %v1206, %v1234
        %1236 = vmatmul.f32.gmra.mxu0 %v1215
        %v1237 = vpop.f32.mrf.mxu0
        %v1238 = vadd.f32 %v1209, %v1237
        %1239 = vdwg.mxu0
        %s1240 = scalar_lea.vmem %s9, 32
        %v1241 = vld [vmem:[%s1240] sm:$0xff]
        %v1242 = vld [vmem:[%s1240 + $0x8] sm:$0xff]
        %v1244 = vsel %vm1107, %v1241, 0
        %v1247 = vsel %vm1107, %v1242, 0
        %1249 = vmatpush.msra.mxu0 0.0
        %1250 = vmatpush.msra.mxu0 0.0
        %1251 = vmatpush.msra.mxu0 0.0
        %1252 = vmatpush.msra.mxu0 0.0
        %1253 = vmatpush.msra.mxu0 0.0
        %1254 = vmatpush.msra.mxu0 0.0
        %1255 = vmatpush.msra.mxu0 0.0
        %1256 = vmatpush.msra.mxu0 0.0
        %1257 = vmatpush.msra.mxu0 0.0
        %1258 = vmatpush.msra.mxu0 0.0
        %1259 = vmatpush.msra.mxu0 0.0
        %1260 = vmatpush.msra.mxu0 0.0
        %1261 = vmatpush.msra.mxu0 0.0
        %1262 = vmatpush.msra.mxu0 0.0
        %1263 = vmatpush.msra.mxu0 0.0
        %1264 = vmatpush.msra.mxu0 %v1116
        %1265 = vmatmul.f32.gmra.mxu0 %v1244
        %v1266 = vpop.f32.mrf.mxu0
        %v1267 = vadd.f32 %v1100, %v1266
        %1268 = vmatmul.f32.gmra.mxu0 %v1247
        %v1269 = vpop.f32.mrf.mxu0
        %v1270 = vadd.f32 %v1105, %v1269
        %1271 = vdwg.mxu0
        %v1272 = vmax.f32 %v1267, 0.0
        %v1273 = vmax.f32 %v1270, 0.0
        %s1274 = scalar_lea.vmem %s11, 32
        %v1275 = vld [vmem:[%s1274] sm:$0xff]
        %v1276 = vld [vmem:[%s1274 + $0x8] sm:$0xff]
        %v1278 = vsel %vm537, %v1272, 0
        %v1281 = vsel %vm537, %v1273, 0
        %1283 = vmatpush.msra.mxu0 0.0
        %1284 = vmatpush.msra.mxu0 0.0
        %1285 = vmatpush.msra.mxu0 0.0
        %1286 = vmatpush.msra.mxu0 0.0
        %1287 = vmatpush.msra.mxu0 0.0
        %1288 = vmatpush.msra.mxu0 0.0
        %1289 = vmatpush.msra.mxu0 0.0
        %1290 = vmatpush.msra.mxu0 0.0
        %1291 = vmatpush.msra.mxu0 0.0
        %1292 = vmatpush.msra.mxu0 0.0
        %1293 = vmatpush.msra.mxu0 0.0
        %1294 = vmatpush.msra.mxu0 0.0
        %1295 = vmatpush.msra.mxu0 0.0
        %1296 = vmatpush.msra.mxu0 0.0
        %1297 = vmatpush.msra.mxu0 %v1276
        %1298 = vmatpush.msra.mxu0 %v1275
        %1299 = vmatmul.f32.gmra.mxu0 %v1278
        %v1300 = vpop.f32.mrf.mxu0
        %v1301 = vadd.f32 0.0, %v1300
        %1302 = vmatmul.f32.gmra.mxu0 %v1281
        %v1303 = vpop.f32.mrf.mxu0
        %v1304 = vadd.f32 0.0, %v1303
        %1305 = vdwg.mxu0
        %v1306 = vadd.f32 %v1235, %v1301
        %v1307 = vadd.f32 %v1238, %v1304
        %s1308 = scalar_lea.vmem %s9, 48
        %v1309 = vld [vmem:[%s1308] sm:$0xff]
        %v1310 = vld [vmem:[%s1308 + $0x8] sm:$0xff]
        %v1312 = vsel %vm1107, %v1309, 0
        %v1315 = vsel %vm1107, %v1310, 0
        %1317 = vmatpush.msra.mxu0 0.0
        %1318 = vmatpush.msra.mxu0 0.0
        %1319 = vmatpush.msra.mxu0 0.0
        %1320 = vmatpush.msra.mxu0 0.0
        %1321 = vmatpush.msra.mxu0 0.0
        %1322 = vmatpush.msra.mxu0 0.0
        %1323 = vmatpush.msra.mxu0 0.0
        %1324 = vmatpush.msra.mxu0 0.0
        %1325 = vmatpush.msra.mxu0 0.0
        %1326 = vmatpush.msra.mxu0 0.0
        %1327 = vmatpush.msra.mxu0 0.0
        %1328 = vmatpush.msra.mxu0 0.0
        %1329 = vmatpush.msra.mxu0 0.0
        %1330 = vmatpush.msra.mxu0 0.0
        %1331 = vmatpush.msra.mxu0 0.0
        %1332 = vmatpush.msra.mxu0 %v1116
        %1333 = vmatmul.f32.gmra.mxu0 %v1312
        %v1334 = vpop.f32.mrf.mxu0
        %v1335 = vadd.f32 %v1100, %v1334
        %1336 = vmatmul.f32.gmra.mxu0 %v1315
        %v1337 = vpop.f32.mrf.mxu0
        %v1338 = vadd.f32 %v1105, %v1337
        %1339 = vdwg.mxu0
        %v1340 = vmax.f32 %v1335, 0.0
        %v1341 = vmax.f32 %v1338, 0.0
        %s1342 = scalar_lea.vmem %s11, 48
        %v1343 = vld [vmem:[%s1342] sm:$0xff]
        %v1344 = vld [vmem:[%s1342 + $0x8] sm:$0xff]
        %v1346 = vsel %vm537, %v1340, 0
        %v1349 = vsel %vm537, %v1341, 0
        %1351 = vmatpush.msra.mxu0 0.0
        %1352 = vmatpush.msra.mxu0 0.0
        %1353 = vmatpush.msra.mxu0 0.0
        %1354 = vmatpush.msra.mxu0 0.0
        %1355 = vmatpush.msra.mxu0 0.0
        %1356 = vmatpush.msra.mxu0 0.0
        %1357 = vmatpush.msra.mxu0 0.0
        %1358 = vmatpush.msra.mxu0 0.0
        %1359 = vmatpush.msra.mxu0 0.0
        %1360 = vmatpush.msra.mxu0 0.0
        %1361 = vmatpush.msra.mxu0 0.0
        %1362 = vmatpush.msra.mxu0 0.0
        %1363 = vmatpush.msra.mxu0 0.0
        %1364 = vmatpush.msra.mxu0 0.0
        %1365 = vmatpush.msra.mxu0 %v1344
        %1366 = vmatpush.msra.mxu0 %v1343
        %1367 = vmatmul.f32.gmra.mxu0 %v1346
        %v1368 = vpop.f32.mrf.mxu0
        %v1369 = vadd.f32 0.0, %v1368
        %1370 = vmatmul.f32.gmra.mxu0 %v1349
        %v1371 = vpop.f32.mrf.mxu0
        %v1372 = vadd.f32 0.0, %v1371
        %1373 = vdwg.mxu0
        %v1374 = vadd.f32 %v1306, %v1369
        %v1375 = vadd.f32 %v1307, %v1372
        %v1376 = vld [vmem:[%s12] sm:$0x7]
        %v1377 = vld [vmem:[%s13] sm:$0x7]
        %1379 = vset.pattern.permute.xlu0 0
        %1380 = vperm.xlu0 %1379, %v1377
        %v1381 = vpop.permute.xlu0 %1380
        %v1384 = vsel %vm537, %v1376, 0
        %1386 = vmatpush.msra.mxu0 0.0
        %1387 = vmatpush.msra.mxu0 0.0
        %1388 = vmatpush.msra.mxu0 0.0
        %1389 = vmatpush.msra.mxu0 0.0
        %1390 = vmatpush.msra.mxu0 0.0
        %1391 = vmatpush.msra.mxu0 0.0
        %1392 = vmatpush.msra.mxu0 0.0
        %1393 = vmatpush.msra.mxu0 0.0
        %1394 = vmatpush.msra.mxu0 0.0
        %1395 = vmatpush.msra.mxu0 0.0
        %1396 = vmatpush.msra.mxu0 0.0
        %1397 = vmatpush.msra.mxu0 0.0
        %1398 = vmatpush.msra.mxu0 0.0
        %1399 = vmatpush.msra.mxu0 0.0
        %1400 = vmatpush.msra.mxu0 %v1375
        %1401 = vmatpush.msra.mxu0 %v1374
        %1402 = vmatmul.f32.gmra.mxu0 %v1384
        %v1403 = vpop.f32.mrf.mxu0
        %v1404 = vadd.f32 %v1381, %v1403
        %1405 = vdwg.mxu0
        %v1406 = vmul.f32 %v1404, 0.5
        %v1407 = vtanh.pop %v1406
        %v1408 = vadd.f32 %v1407, 1.0
        %v1409 = vmul.f32 %v1408, 0.5
        %v1410 = vld [vmem:[#allocation2] sm:$0xff]
        %v1411 = vld [vmem:[#allocation2 + $0x8] sm:$0xff]
        %v1412 = vld [vmem:[#allocation2 + $0x10] sm:$0xff]
        %v1413 = vld [vmem:[#allocation2 + $0x18] sm:$0xff]
        %v1414 = vld [vmem:[#allocation2 + $0x20] sm:$0xff]
        %v1415 = vld [vmem:[#allocation2 + $0x28] sm:$0xff]
        %v1416 = vld [vmem:[#allocation2 + $0x30] sm:$0xff]
        %v1417 = vld [vmem:[#allocation2 + $0x38] sm:$0xff]
        %v1418 = vld [vmem:[#allocation2 + $0x40] sm:$0xff]
        %v1419 = vld [vmem:[#allocation2 + $0x48] sm:$0xff]
        %v1420 = vld [vmem:[#allocation2 + $0x50] sm:$0xff]
        %v1421 = vld [vmem:[#allocation2 + $0x58] sm:$0xff]
        %v1422 = vld [vmem:[#allocation2 + $0x60] sm:$0xff]
        %v1423 = vld [vmem:[#allocation2 + $0x68] sm:$0xff]
        %v1424 = vld [vmem:[#allocation2 + $0x70] sm:$0xff]
        %v1425 = vld [vmem:[#allocation2 + $0x78] sm:$0xff]
        %s1426 = scalar_lea.vmem %s12, 4
        %v1427 = vld [vmem:[%s1426] sm:$0x7]
        %v1429 = vsel %vm537, %v1427, 0
        %1431 = vmatpush.msra.mxu0 0.0
        %1432 = vmatpush.msra.mxu0 0.0
        %1433 = vmatpush.msra.mxu0 0.0
        %1434 = vmatpush.msra.mxu0 0.0
        %1435 = vmatpush.msra.mxu0 0.0
        %1436 = vmatpush.msra.mxu0 0.0
        %1437 = vmatpush.msra.mxu0 0.0
        %1438 = vmatpush.msra.mxu0 0.0
        %1439 = vmatpush.msra.mxu0 0.0
        %1440 = vmatpush.msra.mxu0 0.0
        %1441 = vmatpush.msra.mxu0 0.0
        %1442 = vmatpush.msra.mxu0 0.0
        %1443 = vmatpush.msra.mxu0 0.0
        %1444 = vmatpush.msra.mxu0 0.0
        %1445 = vmatpush.msra.mxu0 %v1375
        %1446 = vmatpush.msra.mxu0 %v1374
        %1447 = vmatmul.f32.gmra.mxu0 %v1429
        %v1448 = vpop.f32.mrf.mxu0
        %v1449 = vadd.f32 %v1381, %v1448
        %1450 = vdwg.mxu0
        %v1451 = vmul.f32 %v1449, 0.5
        %v1452 = vtanh.pop %v1451
        %v1453 = vadd.f32 %v1452, 1.0
        %v1454 = vmul.f32 %v1453, 0.5
        %s1455 = scalar_lea.vmem [#allocation2], 128
        %v1456 = vld [vmem:[%s1455] sm:$0xff]
        %v1457 = vld [vmem:[%s1455 + $0x8] sm:$0xff]
        %v1458 = vld [vmem:[%s1455 + $0x10] sm:$0xff]
        %v1459 = vld [vmem:[%s1455 + $0x18] sm:$0xff]
        %v1460 = vld [vmem:[%s1455 + $0x20] sm:$0xff]
        %v1461 = vld [vmem:[%s1455 + $0x28] sm:$0xff]
        %v1462 = vld [vmem:[%s1455 + $0x30] sm:$0xff]
        %v1463 = vld [vmem:[%s1455 + $0x38] sm:$0xff]
        %v1464 = vld [vmem:[%s1455 + $0x40] sm:$0xff]
        %v1465 = vld [vmem:[%s1455 + $0x48] sm:$0xff]
        %v1466 = vld [vmem:[%s1455 + $0x50] sm:$0xff]
        %v1467 = vld [vmem:[%s1455 + $0x58] sm:$0xff]
        %v1468 = vld [vmem:[%s1455 + $0x60] sm:$0xff]
        %v1469 = vld [vmem:[%s1455 + $0x68] sm:$0xff]
        %v1470 = vld [vmem:[%s1455 + $0x70] sm:$0xff]
        %v1471 = vld [vmem:[%s1455 + $0x78] sm:$0xff]
        %v1473 = vsel %vm1069, %v1454, 0
        %1475 = vmatpush.msra.mxu0 0.0
        %1476 = vmatpush.msra.mxu0 0.0
        %1477 = vmatpush.msra.mxu0 0.0
        %1478 = vmatpush.msra.mxu0 0.0
        %1479 = vmatpush.msra.mxu0 0.0
        %1480 = vmatpush.msra.mxu0 0.0
        %1481 = vmatpush.msra.mxu0 0.0
        %1482 = vmatpush.msra.mxu0 0.0
        %1483 = vmatpush.msra.mxu0 %v1470
        %1484 = vmatpush.msra.mxu0 %v1468
        %1485 = vmatpush.msra.mxu0 %v1466
        %1486 = vmatpush.msra.mxu0 %v1464
        %1487 = vmatpush.msra.mxu0 %v1462
        %1488 = vmatpush.msra.mxu0 %v1460
        %1489 = vmatpush.msra.mxu0 %v1458
        %1490 = vmatpush.msra.mxu0 %v1456
        %1491 = vmatmul.f32.gmra.mxu0 %v1473
        %v1492 = vpop.f32.mrf.mxu0
        %v1493 = vadd.f32 0.0, %v1492
        %1494 = vdwg.mxu0
        %1495 = vmatpush.msra.mxu0 0.0
        %1496 = vmatpush.msra.mxu0 0.0
        %1497 = vmatpush.msra.mxu0 0.0
        %1498 = vmatpush.msra.mxu0 0.0
        %1499 = vmatpush.msra.mxu0 0.0
        %1500 = vmatpush.msra.mxu0 0.0
        %1501 = vmatpush.msra.mxu0 0.0
        %1502 = vmatpush.msra.mxu0 0.0
        %1503 = vmatpush.msra.mxu0 %v1471
        %1504 = vmatpush.msra.mxu0 %v1469
        %1505 = vmatpush.msra.mxu0 %v1467
        %1506 = vmatpush.msra.mxu0 %v1465
        %1507 = vmatpush.msra.mxu0 %v1463
        %1508 = vmatpush.msra.mxu0 %v1461
        %1509 = vmatpush.msra.mxu0 %v1459
        %1510 = vmatpush.msra.mxu0 %v1457
        %1511 = vmatmul.f32.gmra.mxu0 %v1473
        %v1512 = vpop.f32.mrf.mxu0
        %v1513 = vadd.f32 0.0, %v1512
        %1514 = vdwg.mxu0
        %v1516 = vsel %vm1069, %v1409, 0
        %1518 = vmatpush.msra.mxu0 0.0
        %1519 = vmatpush.msra.mxu0 0.0
        %1520 = vmatpush.msra.mxu0 0.0
        %1521 = vmatpush.msra.mxu0 0.0
        %1522 = vmatpush.msra.mxu0 0.0
        %1523 = vmatpush.msra.mxu0 0.0
        %1524 = vmatpush.msra.mxu0 0.0
        %1525 = vmatpush.msra.mxu0 0.0
        %1526 = vmatpush.msra.mxu0 %v1424
        %1527 = vmatpush.msra.mxu0 %v1422
        %1528 = vmatpush.msra.mxu0 %v1420
        %1529 = vmatpush.msra.mxu0 %v1418
        %1530 = vmatpush.msra.mxu0 %v1416
        %1531 = vmatpush.msra.mxu0 %v1414
        %1532 = vmatpush.msra.mxu0 %v1412
        %1533 = vmatpush.msra.mxu0 %v1410
        %1534 = vmatmul.f32.gmra.mxu0 %v1516
        %v1535 = vpop.f32.mrf.mxu0
        %v1536 = vadd.f32 %v1493, %v1535
        %1537 = vdwg.mxu0
        %1538 = vmatpush.msra.mxu0 0.0
        %1539 = vmatpush.msra.mxu0 0.0
        %1540 = vmatpush.msra.mxu0 0.0
        %1541 = vmatpush.msra.mxu0 0.0
        %1542 = vmatpush.msra.mxu0 0.0
        %1543 = vmatpush.msra.mxu0 0.0
        %1544 = vmatpush.msra.mxu0 0.0
        %1545 = vmatpush.msra.mxu0 0.0
        %1546 = vmatpush.msra.mxu0 %v1425
        %1547 = vmatpush.msra.mxu0 %v1423
        %1548 = vmatpush.msra.mxu0 %v1421
        %1549 = vmatpush.msra.mxu0 %v1419
        %1550 = vmatpush.msra.mxu0 %v1417
        %1551 = vmatpush.msra.mxu0 %v1415
        %1552 = vmatpush.msra.mxu0 %v1413
        %1553 = vmatpush.msra.mxu0 %v1411
        %1554 = vmatmul.f32.gmra.mxu0 %v1516
        %v1555 = vpop.f32.mrf.mxu0
        %v1556 = vadd.f32 %v1513, %v1555
        %1557 = vdwg.mxu0
        %s1558 = scalar_lea.vmem %s12, 8
        %v1559 = vld [vmem:[%s1558] sm:$0x7]
        %v1561 = vsel %vm537, %v1559, 0
        %1563 = vmatpush.msra.mxu0 0.0
        %1564 = vmatpush.msra.mxu0 0.0
        %1565 = vmatpush.msra.mxu0 0.0
        %1566 = vmatpush.msra.mxu0 0.0
        %1567 = vmatpush.msra.mxu0 0.0
        %1568 = vmatpush.msra.mxu0 0.0
        %1569 = vmatpush.msra.mxu0 0.0
        %1570 = vmatpush.msra.mxu0 0.0
        %1571 = vmatpush.msra.mxu0 0.0
        %1572 = vmatpush.msra.mxu0 0.0
        %1573 = vmatpush.msra.mxu0 0.0
        %1574 = vmatpush.msra.mxu0 0.0
        %1575 = vmatpush.msra.mxu0 0.0
        %1576 = vmatpush.msra.mxu0 0.0
        %1577 = vmatpush.msra.mxu0 %v1375
        %1578 = vmatpush.msra.mxu0 %v1374
        %1579 = vmatmul.f32.gmra.mxu0 %v1561
        %v1580 = vpop.f32.mrf.mxu0
        %v1581 = vadd.f32 %v1381, %v1580
        %1582 = vdwg.mxu0
        %v1583 = vmul.f32 %v1581, 0.5
        %v1584 = vtanh.pop %v1583
        %v1585 = vadd.f32 %v1584, 1.0
        %v1586 = vmul.f32 %v1585, 0.5
        %s1587 = scalar_lea.vmem [#allocation2], 256
        %v1588 = vld [vmem:[%s1587] sm:$0xff]
        %v1589 = vld [vmem:[%s1587 + $0x8] sm:$0xff]
        %v1590 = vld [vmem:[%s1587 + $0x10] sm:$0xff]
        %v1591 = vld [vmem:[%s1587 + $0x18] sm:$0xff]
        %v1592 = vld [vmem:[%s1587 + $0x20] sm:$0xff]
        %v1593 = vld [vmem:[%s1587 + $0x28] sm:$0xff]
        %v1594 = vld [vmem:[%s1587 + $0x30] sm:$0xff]
        %v1595 = vld [vmem:[%s1587 + $0x38] sm:$0xff]
        %v1596 = vld [vmem:[%s1587 + $0x40] sm:$0xff]
        %v1597 = vld [vmem:[%s1587 + $0x48] sm:$0xff]
        %v1598 = vld [vmem:[%s1587 + $0x50] sm:$0xff]
        %v1599 = vld [vmem:[%s1587 + $0x58] sm:$0xff]
        %v1600 = vld [vmem:[%s1587 + $0x60] sm:$0xff]
        %v1601 = vld [vmem:[%s1587 + $0x68] sm:$0xff]
        %v1602 = vld [vmem:[%s1587 + $0x70] sm:$0xff]
        %v1603 = vld [vmem:[%s1587 + $0x78] sm:$0xff]
        %v1605 = vsel %vm1069, %v1586, 0
        %1607 = vmatpush.msra.mxu0 0.0
        %1608 = vmatpush.msra.mxu0 0.0
        %1609 = vmatpush.msra.mxu0 0.0
        %1610 = vmatpush.msra.mxu0 0.0
        %1611 = vmatpush.msra.mxu0 0.0
        %1612 = vmatpush.msra.mxu0 0.0
        %1613 = vmatpush.msra.mxu0 0.0
        %1614 = vmatpush.msra.mxu0 0.0
        %1615 = vmatpush.msra.mxu0 %v1602
        %1616 = vmatpush.msra.mxu0 %v1600
        %1617 = vmatpush.msra.mxu0 %v1598
        %1618 = vmatpush.msra.mxu0 %v1596
        %1619 = vmatpush.msra.mxu0 %v1594
        %1620 = vmatpush.msra.mxu0 %v1592
        %1621 = vmatpush.msra.mxu0 %v1590
        %1622 = vmatpush.msra.mxu0 %v1588
        %1623 = vmatmul.f32.gmra.mxu0 %v1605
        %v1624 = vpop.f32.mrf.mxu0
        %v1625 = vadd.f32 0.0, %v1624
        %1626 = vdwg.mxu0
        %1627 = vmatpush.msra.mxu0 0.0
        %1628 = vmatpush.msra.mxu0 0.0
        %1629 = vmatpush.msra.mxu0 0.0
        %1630 = vmatpush.msra.mxu0 0.0
        %1631 = vmatpush.msra.mxu0 0.0
        %1632 = vmatpush.msra.mxu0 0.0
        %1633 = vmatpush.msra.mxu0 0.0
        %1634 = vmatpush.msra.mxu0 0.0
        %1635 = vmatpush.msra.mxu0 %v1603
        %1636 = vmatpush.msra.mxu0 %v1601
        %1637 = vmatpush.msra.mxu0 %v1599
        %1638 = vmatpush.msra.mxu0 %v1597
        %1639 = vmatpush.msra.mxu0 %v1595
        %1640 = vmatpush.msra.mxu0 %v1593
        %1641 = vmatpush.msra.mxu0 %v1591
        %1642 = vmatpush.msra.mxu0 %v1589
        %1643 = vmatmul.f32.gmra.mxu0 %v1605
        %v1644 = vpop.f32.mrf.mxu0
        %v1645 = vadd.f32 0.0, %v1644
        %1646 = vdwg.mxu0
        %v1647 = vadd.f32 %v1536, %v1625
        %v1648 = vadd.f32 %v1556, %v1645
        %s1649 = scalar_lea.vmem %s12, 12
        %v1650 = vld [vmem:[%s1649] sm:$0x7]
        %v1652 = vsel %vm537, %v1650, 0
        %1654 = vmatpush.msra.mxu0 0.0
        %1655 = vmatpush.msra.mxu0 0.0
        %1656 = vmatpush.msra.mxu0 0.0
        %1657 = vmatpush.msra.mxu0 0.0
        %1658 = vmatpush.msra.mxu0 0.0
        %1659 = vmatpush.msra.mxu0 0.0
        %1660 = vmatpush.msra.mxu0 0.0
        %1661 = vmatpush.msra.mxu0 0.0
        %1662 = vmatpush.msra.mxu0 0.0
        %1663 = vmatpush.msra.mxu0 0.0
        %1664 = vmatpush.msra.mxu0 0.0
        %1665 = vmatpush.msra.mxu0 0.0
        %1666 = vmatpush.msra.mxu0 0.0
        %1667 = vmatpush.msra.mxu0 0.0
        %1668 = vmatpush.msra.mxu0 %v1375
        %1669 = vmatpush.msra.mxu0 %v1374
        %1670 = vmatmul.f32.gmra.mxu0 %v1652
        %v1671 = vpop.f32.mrf.mxu0
        %v1672 = vadd.f32 %v1381, %v1671
        %1673 = vdwg.mxu0
        %v1674 = vmul.f32 %v1672, 0.5
        %v1675 = vtanh.pop %v1674
        %v1676 = vadd.f32 %v1675, 1.0
        %v1677 = vmul.f32 %v1676, 0.5
        %s1678 = scalar_lea.vmem [#allocation2], 384
        %v1679 = vld [vmem:[%s1678] sm:$0xff]
        %v1680 = vld [vmem:[%s1678 + $0x8] sm:$0xff]
        %v1681 = vld [vmem:[%s1678 + $0x10] sm:$0xff]
        %v1682 = vld [vmem:[%s1678 + $0x18] sm:$0xff]
        %v1683 = vld [vmem:[%s1678 + $0x20] sm:$0xff]
        %v1684 = vld [vmem:[%s1678 + $0x28] sm:$0xff]
        %v1685 = vld [vmem:[%s1678 + $0x30] sm:$0xff]
        %v1686 = vld [vmem:[%s1678 + $0x38] sm:$0xff]
        %v1687 = vld [vmem:[%s1678 + $0x40] sm:$0xff]
        %v1688 = vld [vmem:[%s1678 + $0x48] sm:$0xff]
        %v1689 = vld [vmem:[%s1678 + $0x50] sm:$0xff]
        %v1690 = vld [vmem:[%s1678 + $0x58] sm:$0xff]
        %v1691 = vld [vmem:[%s1678 + $0x60] sm:$0xff]
        %v1692 = vld [vmem:[%s1678 + $0x68] sm:$0xff]
        %v1693 = vld [vmem:[%s1678 + $0x70] sm:$0xff]
        %v1694 = vld [vmem:[%s1678 + $0x78] sm:$0xff]
        %v1696 = vsel %vm1069, %v1677, 0
        %1698 = vmatpush.msra.mxu0 0.0
        %1699 = vmatpush.msra.mxu0 0.0
        %1700 = vmatpush.msra.mxu0 0.0
        %1701 = vmatpush.msra.mxu0 0.0
        %1702 = vmatpush.msra.mxu0 0.0
        %1703 = vmatpush.msra.mxu0 0.0
        %1704 = vmatpush.msra.mxu0 0.0
        %1705 = vmatpush.msra.mxu0 0.0
        %1706 = vmatpush.msra.mxu0 %v1693
        %1707 = vmatpush.msra.mxu0 %v1691
        %1708 = vmatpush.msra.mxu0 %v1689
        %1709 = vmatpush.msra.mxu0 %v1687
        %1710 = vmatpush.msra.mxu0 %v1685
        %1711 = vmatpush.msra.mxu0 %v1683
        %1712 = vmatpush.msra.mxu0 %v1681
        %1713 = vmatpush.msra.mxu0 %v1679
        %1714 = vmatmul.f32.gmra.mxu0 %v1696
        %v1715 = vpop.f32.mrf.mxu0
        %v1716 = vadd.f32 0.0, %v1715
        %1717 = vdwg.mxu0
        %1718 = vmatpush.msra.mxu0 0.0
        %1719 = vmatpush.msra.mxu0 0.0
        %1720 = vmatpush.msra.mxu0 0.0
        %1721 = vmatpush.msra.mxu0 0.0
        %1722 = vmatpush.msra.mxu0 0.0
        %1723 = vmatpush.msra.mxu0 0.0
        %1724 = vmatpush.msra.mxu0 0.0
        %1725 = vmatpush.msra.mxu0 0.0
        %1726 = vmatpush.msra.mxu0 %v1694
        %1727 = vmatpush.msra.mxu0 %v1692
        %1728 = vmatpush.msra.mxu0 %v1690
        %1729 = vmatpush.msra.mxu0 %v1688
        %1730 = vmatpush.msra.mxu0 %v1686
        %1731 = vmatpush.msra.mxu0 %v1684
        %1732 = vmatpush.msra.mxu0 %v1682
        %1733 = vmatpush.msra.mxu0 %v1680
        %1734 = vmatmul.f32.gmra.mxu0 %v1696
        %v1735 = vpop.f32.mrf.mxu0
        %v1736 = vadd.f32 0.0, %v1735
        %1737 = vdwg.mxu0
        %v1738 = vadd.f32 %v1647, %v1716
        %v1739 = vadd.f32 %v1648, %v1736
        %v1742 = vrot.slane %v1739, 4
        %v1743 = vsel %vm1114, %v1738, %v1742
        %1745 = vst [vmem:[%s511] sm:$0x77] %v1743
        %p1746 = scmp.lt.s32.totalorder %s27, 1
        %s1747 = scalar_select %p1746, %s27, 1
        %s1748 = smul.addr %s1747, 2
        %s1749 = smul.addr %s1748, 4
        %s1750 = scalar_lea.vmem %s15, %s1749
        // Predicated region
        $region85: #{tpu_custom_call.1} parent=79 // pred_check
          %p1751 = pneg %p365
        $region86: #{tpu_custom_call.1} parent=79 // pred_check_branch
          %1753 = sbr.rel (%p1751) target = $region88
        $region87: #{tpu_custom_call.1} parent=79 // pred_region
          _
        $region88: #{tpu_custom_call.1} parent=79 // pred_fallthru
          _
      $region80: #{tpu_custom_call.1} parent=5 // pred_fallthru
        _
      %p1754 = scmp.le.s32.totalorder 2, %s22
      // Predicated region
      $region89: #{tpu_custom_call.1} parent=5 // pred_check
        %p1755 = pneg %p1754
      $region90: #{tpu_custom_call.1} parent=5 // pred_check_branch
        %1757 = sbr.rel (%p1755) target = $region92
      $region91: #{tpu_custom_call.1} parent=5 // pred_region
        %s1758 = ssub.s32 %s22, 2
        // Predicated region
        $region93: #{tpu_custom_call.1} parent=91 // pred_check
          %p1759 = pneg %p371
        $region94: #{tpu_custom_call.1} parent=91 // pred_check_branch
          %1761 = sbr.rel (%p1759) target = $region96
        $region95: #{tpu_custom_call.1} parent=91 // pred_region
          %p1762 = scmp.lt.s32.totalorder %s28, 1
          %s1763 = scalar_select %p1762, %s28, 1
          %s1764 = smul.addr %s1763, 2
          %s1765 = smul.addr %s1764, 4
          %s1766 = scalar_lea.vmem %s15, %s1765
        $region96: #{tpu_custom_call.1} parent=91 // pred_fallthru
          _
      $region92: #{tpu_custom_call.1} parent=5 // pred_fallthru
        _
    $region6: #{tpu_custom_call.1} parent=1 // loop_footer
      %s26 = sadd.s32 1, %s22
    $region7: #{tpu_custom_call.1} parent=1 // loop_footer_branch
      %21 = sbr.rel target = $region3
    $region8: #{tpu_custom_call.1} parent=1 // loop_exit
      _
    %1767 = vsyncpa [#allocation3], 1
    %s1768 = scalar_lea.sflag [#allocation3], 1
    %1769 = vsyncpa %s1768, 1

</llo_original>
